<compile_context>
chip_gen: v6e
topology: v6e:2x2x1
jax: 0.10.0
libtpu: 0.0.40
codegen_flags: <defaults>
</compile_context>

<pallas_src>
import functools

import jax
import jax.numpy as jnp
from jax import lax
from jax.experimental import pallas as pl
from jax.experimental.pallas import tpu as pltpu


def _dsn_fused_kernel(col_ref, mask_ref, wenc_ref, benc_ref, wdec_ref, bdec_ref,
                      whead_ref, bhead_ref, out_ref, *, TH, W, WEp):
    """One row tile of the fused DSN forward.

    col_ref  : (1, 1, RE*WEp, 32) bf16  wrapper-side encoder im2col window
                                        (RE = TH+2 rows incl. 1-row halo,
                                         K = 9*C_in zero-padded to 32)
    mask_ref : (1, RE*WEp, 1)     f32   0/1 mask zeroing the decoder's padding
                                        region of the encoder output
    wenc_ref : (32, C_enc)        bf16      benc_ref : (1, C_enc)  f32
    wdec_ref : (3, 3*C_enc, C_feat) bf16    bdec_ref : (1, C_feat) f32
    whead_ref: (8, C_feat) f32 (rows 0:3 fg, 3:5 cd, 5:8 zero)
    bhead_ref: (8, 1) f32
    out_ref  : (1, 8, TH*W) f32   fused channel-first heads output
    """
    C_enc = wenc_ref.shape[-1]
    C_feat = wdec_ref.shape[-1]
    RE = TH + 2

    # ---- encoder: ONE aligned K=32 matmul (im2col precomputed in wrapper) ----
    col = col_ref[0, 0]                                           # (RE*WEp, 32)
    enc = jnp.dot(col, wenc_ref[...], preferred_element_type=jnp.float32)
    enc = jnp.maximum(enc + benc_ref[...], 0.0) * mask_ref[0]     # halo/pad -> 0
    ep = enc.astype(jnp.bfloat16).reshape(RE, WEp, C_enc)

    # ---- decoder: 3 dx-shifted operands, 3 accumulated K=3*C_enc matmuls ----
    acc = jnp.zeros((TH * W, C_feat), jnp.float32)
    for dx in range(3):
        sh = ep[:, dx:dx + W, :]                                  # (RE, W, C_enc)
        col_dx = jnp.concatenate(                                 # dy taps: free
            [sh[0:TH], sh[1:TH + 1], sh[2:TH + 2]], axis=-1)      # leading slices
        acc = acc + jnp.dot(col_dx.reshape(TH * W, 3 * C_enc), wdec_ref[dx],
                            preferred_element_type=jnp.float32)
    feats = jnp.maximum(acc + bdec_ref[...], 0.0)                 # (TH*W, C_feat)

    # ---- fused heads: one f32 NT matmul -> channel-first, aligned 8-row store ----
    heads = lax.dot_general(
        whead_ref[...], feats,
        dimension_numbers=(((1,), (1,)), ((), ())),
        preferred_element_type=jnp.float32) + bhead_ref[...]      # (8, TH*W)
    out_ref[...] = heads.reshape(1, 8, TH * W)


def _pick_tile_rows(H, W, max_rows):
    """Largest divisor of H <= max_rows whose TH*W is a multiple of 128."""
    divisors = [d for d in range(1, min(H, max_rows) + 1) if H % d == 0]
    lane_dense = [d for d in divisors if (d * W) % 128 == 0]
    if lane_dense:
        return lane_dense[-1]
    # TODO(synk): rare shapes with no lane-dense divisor fall back to a single
    # row tile; fine for small images, VMEM-heavy for very large ones.
    return H


def depth_seeding_network(xyz_img, params, *, tile_rows=32):
    """xyz_img: [N, 3, H, W] f32 -> (fg_logits [N,3,H,W], center_offsets [N,2,H,W])."""
    N, C_in, H, W = xyz_img.shape
    C_enc = params["enc_w"].shape[-1]
    C_feat = params["dec_w"].shape[-1]
    assert W % 8 == 0, "W must be a multiple of 8"

    TH = _pick_tile_rows(H, W, tile_rows)
    T = H // TH
    RE = TH + 2                          # encoder rows per tile incl. 1-row halo
    WEp = ((W + 2 + 7) // 8) * 8         # encoder cols incl. 1-col halo, 8-aligned
    KE = 32                              # encoder im2col K (9*C_in = 27 -> 32)

    # ---- wrapper-side encoder im2col (bf16), per-row-window tile layout ----
    x_nhwc = jnp.transpose(xyz_img, (0, 2, 3, 1)).astype(jnp.bfloat16)
    # padded input covering encoder-output rows [-1, H] and cols [-1, WEp-2]
    xpad = jnp.pad(x_nhwc, ((0, 0), (2, 2), (2, WEp - W), (0, 0)))
    taps = [xpad[:, dy:dy + H + 2, dx:dx + WEp, :]
            for dy in range(3) for dx in range(3)]
    col = jnp.concatenate(taps, axis=-1)                         # (N, H+2, WEp, 27)
    col = jnp.pad(col, ((0, 0), (0, 0), (0, 0), (0, KE - 9 * C_in)))
    ridx = jnp.arange(T)[:, None] * TH + jnp.arange(RE)[None, :]  # (T, RE) rows
    col = col[:, ridx].reshape(N, T, RE * WEp, KE)               # halo rows duplicated

    # 0/1 mask: zero the encoder-output positions that are the decoder's zero
    # padding (rows outside the image, left/right padding columns).
    g = (jnp.arange(T)[:, None] * TH - 1) + jnp.arange(RE)[None, :]   # enc rows
    row_ok = (g >= 0) & (g < H)                                       # (T, RE)
    c = jnp.arange(WEp) - 1                                           # enc cols
    col_ok = (c >= 0) & (c < W)                                       # (WEp,)
    mask = (row_ok[:, :, None] & col_ok[None, None, :]).astype(jnp.float32)
    mask = mask.reshape(T, RE * WEp, 1)

    # ---- weight packing (once) ----
    wenc = jnp.pad(params["enc_w"].reshape(9 * C_in, C_enc),
                   ((0, KE - 9 * C_in), (0, 0))).astype(jnp.bfloat16)
    wdec = jnp.transpose(params["dec_w"], (1, 0, 2, 3)) \
              .reshape(3, 3 * C_enc, C_feat).astype(jnp.bfloat16)      # per-dx (dy,ci)
    whead = jnp.concatenate(
        [params["fg_w"].T, params["cd_w"].T, jnp.zeros((3, C_feat), jnp.float32)],
        axis=0).astype(jnp.float32)                                    # (8, C_feat)
    benc = params["enc_b"].astype(jnp.float32).reshape(1, C_enc)
    bdec = params["dec_b"].astype(jnp.float32).reshape(1, C_feat)
    bhead = jnp.concatenate(
        [params["fg_b"], params["cd_b"], jnp.zeros((3,), jnp.float32)]
    ).astype(jnp.float32).reshape(8, 1)

    kernel = functools.partial(_dsn_fused_kernel, TH=TH, W=W, WEp=WEp)

    out = pl.pallas_call(
        kernel,
        out_shape=jax.ShapeDtypeStruct((N, 8, H * W), jnp.float32),
        grid=(N, T),
        in_specs=[
            pl.BlockSpec((1, 1, RE * WEp, KE), lambda n, t: (n, t, 0, 0)),
            pl.BlockSpec((1, RE * WEp, 1), lambda n, t: (t, 0, 0)),
            pl.BlockSpec((KE, C_enc), lambda n, t: (0, 0)),
            pl.BlockSpec((1, C_enc), lambda n, t: (0, 0)),
            pl.BlockSpec((3, 3 * C_enc, C_feat), lambda n, t: (0, 0, 0)),
            pl.BlockSpec((1, C_feat), lambda n, t: (0, 0)),
            pl.BlockSpec((8, C_feat), lambda n, t: (0, 0)),
            pl.BlockSpec((8, 1), lambda n, t: (0, 0)),
        ],
        out_specs=pl.BlockSpec((1, 8, TH * W), lambda n, t: (n, 0, t)),
        compiler_params=pltpu.CompilerParams(
            dimension_semantics=("parallel", "parallel"),
            vmem_limit_bytes=64 * 1024 * 1024,
        ),
    )(col, mask, wenc, benc, wdec, bdec, whead, bhead)

    out = out.reshape(N, 8, H, W)                 # free reshape, already NCHW
    fg_logits = out[:, 0:3]
    center_offsets = out[:, 3:5]
    return fg_logits, center_offsets


def init_params(key, c_in=3, c_enc=32, c_feat=32):
    ks = jax.random.split(key, 4)

    def w_init(k, shape, fan_in):
        return jax.random.normal(k, shape, jnp.float32) / jnp.sqrt(fan_in)

    return {
        "enc_w": w_init(ks[0], (3, 3, c_in, c_enc), 9 * c_in),
        "enc_b": jnp.zeros((c_enc,), jnp.float32),
        "dec_w": w_init(ks[1], (3, 3, c_enc, c_feat), 9 * c_enc),
        "dec_b": jnp.zeros((c_feat,), jnp.float32),
        "fg_w": w_init(ks[2], (c_feat, 3), c_feat),
        "fg_b": jnp.zeros((3,), jnp.float32),
        "cd_w": w_init(ks[3], (c_feat, 2), c_feat),
        "cd_b": jnp.zeros((2,), jnp.float32),
    }


def _reference_dsn(xyz_img, params):
    """Pure-JAX (XLA) f32 reference of the same concrete DSN."""
    def conv3x3(x, w, b):
        y = lax.conv_general_dilated(
            x, w, window_strides=(1, 1), padding=((1, 1), (1, 1)),
            dimension_numbers=("NCHW", "HWIO", "NCHW"))
        return jax.nn.relu(y + b.reshape(1, -1, 1, 1))

    h = conv3x3(xyz_img, params["enc_w"], params["enc_b"])
    feats = conv3x3(h, params["dec_w"], params["dec_b"])
    fg = jnp.einsum("nchw,cq->nqhw", feats, params["fg_w"]) \
        + params["fg_b"].reshape(1, -1, 1, 1)
    cd = jnp.einsum("nchw,cq->nqhw", feats, params["cd_w"]) \
        + params["cd_b"].reshape(1, -1, 1, 1)
    return fg, cd


if __name__ == "__main__":
    key = jax.random.PRNGKey(0)
    k_params, k_x = jax.random.split(key)

    N, C, H, W = 2, 3, 16, 16                 # xyz depth image: [N, 3, H, W]
    xyz_img = jax.random.normal(k_x, (N, C, H, W), jnp.float32)
    params = init_params(k_params, c_in=C, c_enc=32, c_feat=32)

    fg_logits, center_offsets = jax.jit(depth_seeding_network)(xyz_img, params)
    jax.block_until_ready((fg_logits, center_offsets))

    assert fg_logits.shape == (N, 3, H, W), fg_logits.shape
    assert center_offsets.shape == (N, 2, H, W), center_offsets.shape
    assert fg_logits.dtype == jnp.float32 and center_offsets.dtype == jnp.float32

    # Numerical check vs. pure-JAX reference (tolerance covers the bf16 matmul
    # operands used for the convs; accumulation and the head matmul are f32).
    fg_want, cd_want = _reference_dsn(xyz_img, params)
    assert float(jnp.max(jnp.abs(fg_logits - fg_want))) < 0.25
    assert float(jnp.max(jnp.abs(center_offsets - cd_want))) < 0.25

    print("KERNEL_OK")
</pallas_src>

<mosaic_0001>
module attributes {stable_mosaic.version = 11 : i64} {
  func.func @_dsn_fused_kernel(%arg0: i32, %arg1: i32, %arg2: memref<1x1x432x32xbf16, #tpu.memory_space<vmem>>, %arg3: memref<1x432x1xf32, #tpu.memory_space<vmem>>, %arg4: memref<32x32xbf16, #tpu.memory_space<vmem>>, %arg5: memref<1x32xf32, #tpu.memory_space<vmem>>, %arg6: memref<3x96x32xbf16, #tpu.memory_space<vmem>>, %arg7: memref<1x32xf32, #tpu.memory_space<vmem>>, %arg8: memref<8x32xf32, #tpu.memory_space<vmem>>, %arg9: memref<8x1xf32, #tpu.memory_space<vmem>>, %arg10: memref<1x8x256xf32, #tpu.memory_space<vmem>>) attributes {dimension_semantics = [#tpu.dimension_semantics<parallel>, #tpu.dimension_semantics<parallel>], iteration_bounds = array<i64: 2, 1>, scalar_prefetch = 0 : i64, scratch_operands = 0 : i64, tpu.core_type = #tpu.core_type<tc>, window_params = [{transform_indices = @transform_0, window_bounds = array<i64: 1, 1, 432, 32>}, {transform_indices = @transform_1, window_bounds = array<i64: 1, 432, 1>}, {pipeline_mode = #tpu.pipeline_mode<synchronous>, transform_indices = @transform_2, window_bounds = array<i64: 32, 32>}, {pipeline_mode = #tpu.pipeline_mode<synchronous>, transform_indices = @transform_3, window_bounds = array<i64: 1, 32>}, {pipeline_mode = #tpu.pipeline_mode<synchronous>, transform_indices = @transform_4, window_bounds = array<i64: 3, 96, 32>}, {pipeline_mode = #tpu.pipeline_mode<synchronous>, transform_indices = @transform_5, window_bounds = array<i64: 1, 32>}, {pipeline_mode = #tpu.pipeline_mode<synchronous>, transform_indices = @transform_6, window_bounds = array<i64: 8, 32>}, {pipeline_mode = #tpu.pipeline_mode<synchronous>, transform_indices = @transform_7, window_bounds = array<i64: 8, 1>}, {transform_indices = @transform_8, window_bounds = array<i64: 1, 8, 256>}]} {
    %c0 = arith.constant 0 : index
    %c0_0 = arith.constant 0 : index
    %c0_1 = arith.constant 0 : index
    %c0_2 = arith.constant 0 : index
    %0 = vector.load %arg2[%c0, %c0_0, %c0_1, %c0_2] : memref<1x1x432x32xbf16, #tpu.memory_space<vmem>>, vector<1x1x432x32xbf16>
    %1 = vector.shape_cast %0 : vector<1x1x432x32xbf16> to vector<432x32xbf16>
    %c0_3 = arith.constant 0 : index
    %c0_4 = arith.constant 0 : index
    %2 = vector.load %arg4[%c0_3, %c0_4] : memref<32x32xbf16, #tpu.memory_space<vmem>>, vector<32x32xbf16>
    %cst = arith.constant dense<0.000000e+00> : vector<432x32xf32>
    %3 = tpu.matmul %1, %2, %cst {dimension_numbers = #tpu.dot_dimension_numbers<[1], [0], [0], [1], [0, 0, 1, 1], [], []>} : vector<432x32xbf16>, vector<32x32xbf16>, vector<432x32xf32> -> vector<432x32xf32>
    %c0_5 = arith.constant 0 : index
    %c0_6 = arith.constant 0 : index
    %4 = vector.load %arg5[%c0_5, %c0_6] : memref<1x32xf32, #tpu.memory_space<vmem>>, vector<1x32xf32>
    %5 = vector.broadcast %4 : vector<1x32xf32> to vector<432x32xf32>
    %6 = arith.addf %3, %5 : vector<432x32xf32>
    %cst_7 = arith.constant 0.000000e+00 : f32
    %7 = vector.broadcast %cst_7 : f32 to vector<432x32xf32>
    %8 = arith.maximumf %6, %7 : vector<432x32xf32>
    %c0_8 = arith.constant 0 : index
    %c0_9 = arith.constant 0 : index
    %c0_10 = arith.constant 0 : index
    %9 = vector.load %arg3[%c0_8, %c0_9, %c0_10] : memref<1x432x1xf32, #tpu.memory_space<vmem>>, vector<1x432x1xf32>
    %10 = vector.shape_cast %9 : vector<1x432x1xf32> to vector<432x1xf32>
    %11 = vector.broadcast %10 : vector<432x1xf32> to vector<432x32xf32>
    %12 = arith.mulf %8, %11 : vector<432x32xf32>
    %13 = arith.truncf %12 : vector<432x32xf32> to vector<432x32xbf16>
    %14 = vector.shape_cast %13 : vector<432x32xbf16> to vector<18x24x32xbf16>
    %cst_11 = arith.constant 0.000000e+00 : f32
    %15 = vector.broadcast %cst_11 : f32 to vector<256x32xf32>
    %16 = vector.extract_strided_slice %14 {offsets = [0, 0, 0], sizes = [18, 16, 32], strides = [1, 1, 1]} : vector<18x24x32xbf16> to vector<18x16x32xbf16>
    %17 = vector.extract_strided_slice %16 {offsets = [0, 0, 0], sizes = [16, 16, 32], strides = [1, 1, 1]} : vector<18x16x32xbf16> to vector<16x16x32xbf16>
    %18 = vector.extract_strided_slice %16 {offsets = [1, 0, 0], sizes = [16, 16, 32], strides = [1, 1, 1]} : vector<18x16x32xbf16> to vector<16x16x32xbf16>
    %19 = vector.extract_strided_slice %16 {offsets = [2, 0, 0], sizes = [16, 16, 32], strides = [1, 1, 1]} : vector<18x16x32xbf16> to vector<16x16x32xbf16>
    %20 = tpu.concatenate %17, %18, %19 in 2 : vector<16x16x32xbf16>, vector<16x16x32xbf16>, vector<16x16x32xbf16> -> vector<16x16x96xbf16>
    %21 = vector.shape_cast %20 : vector<16x16x96xbf16> to vector<256x96xbf16>
    %c0_12 = arith.constant 0 : index
    %c0_13 = arith.constant 0 : index
    %c0_14 = arith.constant 0 : index
    %22 = vector.load %arg6[%c0_12, %c0_13, %c0_14] : memref<3x96x32xbf16, #tpu.memory_space<vmem>>, vector<1x96x32xbf16>
    %23 = vector.shape_cast %22 : vector<1x96x32xbf16> to vector<96x32xbf16>
    %cst_15 = arith.constant dense<0.000000e+00> : vector<256x32xf32>
    %24 = tpu.matmul %21, %23, %cst_15 {dimension_numbers = #tpu.dot_dimension_numbers<[1], [0], [0], [1], [0, 0, 1, 1], [], []>} : vector<256x96xbf16>, vector<96x32xbf16>, vector<256x32xf32> -> vector<256x32xf32>
    %25 = arith.addf %15, %24 : vector<256x32xf32>
    %26 = vector.extract_strided_slice %14 {offsets = [0, 1, 0], sizes = [18, 16, 32], strides = [1, 1, 1]} : vector<18x24x32xbf16> to vector<18x16x32xbf16>
    %27 = vector.extract_strided_slice %26 {offsets = [0, 0, 0], sizes = [16, 16, 32], strides = [1, 1, 1]} : vector<18x16x32xbf16> to vector<16x16x32xbf16>
    %28 = vector.extract_strided_slice %26 {offsets = [1, 0, 0], sizes = [16, 16, 32], strides = [1, 1, 1]} : vector<18x16x32xbf16> to vector<16x16x32xbf16>
    %29 = vector.extract_strided_slice %26 {offsets = [2, 0, 0], sizes = [16, 16, 32], strides = [1, 1, 1]} : vector<18x16x32xbf16> to vector<16x16x32xbf16>
    %30 = tpu.concatenate %27, %28, %29 in 2 : vector<16x16x32xbf16>, vector<16x16x32xbf16>, vector<16x16x32xbf16> -> vector<16x16x96xbf16>
    %31 = vector.shape_cast %30 : vector<16x16x96xbf16> to vector<256x96xbf16>
    %c1 = arith.constant 1 : index
    %c0_16 = arith.constant 0 : index
    %c0_17 = arith.constant 0 : index
    %32 = vector.load %arg6[%c1, %c0_16, %c0_17] : memref<3x96x32xbf16, #tpu.memory_space<vmem>>, vector<1x96x32xbf16>
    %33 = vector.shape_cast %32 : vector<1x96x32xbf16> to vector<96x32xbf16>
    %cst_18 = arith.constant dense<0.000000e+00> : vector<256x32xf32>
    %34 = tpu.matmul %31, %33, %cst_18 {dimension_numbers = #tpu.dot_dimension_numbers<[1], [0], [0], [1], [0, 0, 1, 1], [], []>} : vector<256x96xbf16>, vector<96x32xbf16>, vector<256x32xf32> -> vector<256x32xf32>
    %35 = arith.addf %25, %34 : vector<256x32xf32>
    %36 = vector.extract_strided_slice %14 {offsets = [0, 2, 0], sizes = [18, 16, 32], strides = [1, 1, 1]} : vector<18x24x32xbf16> to vector<18x16x32xbf16>
    %37 = vector.extract_strided_slice %36 {offsets = [0, 0, 0], sizes = [16, 16, 32], strides = [1, 1, 1]} : vector<18x16x32xbf16> to vector<16x16x32xbf16>
    %38 = vector.extract_strided_slice %36 {offsets = [1, 0, 0], sizes = [16, 16, 32], strides = [1, 1, 1]} : vector<18x16x32xbf16> to vector<16x16x32xbf16>
    %39 = vector.extract_strided_slice %36 {offsets = [2, 0, 0], sizes = [16, 16, 32], strides = [1, 1, 1]} : vector<18x16x32xbf16> to vector<16x16x32xbf16>
    %40 = tpu.concatenate %37, %38, %39 in 2 : vector<16x16x32xbf16>, vector<16x16x32xbf16>, vector<16x16x32xbf16> -> vector<16x16x96xbf16>
    %41 = vector.shape_cast %40 : vector<16x16x96xbf16> to vector<256x96xbf16>
    %c2 = arith.constant 2 : index
    %c0_19 = arith.constant 0 : index
    %c0_20 = arith.constant 0 : index
    %42 = vector.load %arg6[%c2, %c0_19, %c0_20] : memref<3x96x32xbf16, #tpu.memory_space<vmem>>, vector<1x96x32xbf16>
    %43 = vector.shape_cast %42 : vector<1x96x32xbf16> to vector<96x32xbf16>
    %cst_21 = arith.constant dense<0.000000e+00> : vector<256x32xf32>
    %44 = tpu.matmul %41, %43, %cst_21 {dimension_numbers = #tpu.dot_dimension_numbers<[1], [0], [0], [1], [0, 0, 1, 1], [], []>} : vector<256x96xbf16>, vector<96x32xbf16>, vector<256x32xf32> -> vector<256x32xf32>
    %45 = arith.addf %35, %44 : vector<256x32xf32>
    %c0_22 = arith.constant 0 : index
    %c0_23 = arith.constant 0 : index
    %46 = vector.load %arg7[%c0_22, %c0_23] : memref<1x32xf32, #tpu.memory_space<vmem>>, vector<1x32xf32>
    %47 = vector.broadcast %46 : vector<1x32xf32> to vector<256x32xf32>
    %48 = arith.addf %45, %47 : vector<256x32xf32>
    %cst_24 = arith.constant 0.000000e+00 : f32
    %49 = vector.broadcast %cst_24 : f32 to vector<256x32xf32>
    %50 = arith.maximumf %48, %49 : vector<256x32xf32>
    %c0_25 = arith.constant 0 : index
    %c0_26 = arith.constant 0 : index
    %51 = vector.load %arg8[%c0_25, %c0_26] : memref<8x32xf32, #tpu.memory_space<vmem>>, vector<8x32xf32>
    %cst_27 = arith.constant dense<0.000000e+00> : vector<8x256xf32>
    %52 = tpu.matmul %51, %50, %cst_27 {dimension_numbers = #tpu.dot_dimension_numbers<[1], [1], [0], [0], [0, 0, 1, 0], [], []>} : vector<8x32xf32>, vector<256x32xf32>, vector<8x256xf32> -> vector<8x256xf32>
    %c0_28 = arith.constant 0 : index
    %c0_29 = arith.constant 0 : index
    %53 = vector.load %arg9[%c0_28, %c0_29] : memref<8x1xf32, #tpu.memory_space<vmem>>, vector<8x1xf32>
    %54 = vector.broadcast %53 : vector<8x1xf32> to vector<8x256xf32>
    %55 = arith.addf %52, %54 : vector<8x256xf32>
    %56 = vector.shape_cast %55 : vector<8x256xf32> to vector<1x8x256xf32>
    %c0_30 = arith.constant 0 : index
    %c0_31 = arith.constant 0 : index
    %c0_32 = arith.constant 0 : index
    %57 = vector.load %arg10[%c0_30, %c0_31, %c0_32] : memref<1x8x256xf32, #tpu.memory_space<vmem>>, vector<1x8x256xf32>
    tpu.vector_store %arg10[%c0_30, %c0_31, %c0_32], %56 {strides = array<i32>} : memref<1x8x256xf32, #tpu.memory_space<vmem>>, vector<1x8x256xf32>,
    return
  }
  func.func @transform_0(%arg0: i32, %arg1: i32) -> (i32, i32, i32, i32) {
    %c0_i32 = arith.constant 0 : i32
    %c0_i32_0 = arith.constant 0 : i32
    %c0_i32_1 = arith.constant 0 : i32
    return %arg0, %arg1, %c0_i32, %c0_i32_0 : i32, i32, i32, i32
  }
  func.func @transform_1(%arg0: i32, %arg1: i32) -> (i32, i32, i32) {
    %c0_i32 = arith.constant 0 : i32
    %c0_i32_0 = arith.constant 0 : i32
    %c0_i32_1 = arith.constant 0 : i32
    return %arg1, %c0_i32, %c0_i32_0 : i32, i32, i32
  }
  func.func @transform_2(%arg0: i32, %arg1: i32) -> (i32, i32) {
    %c0_i32 = arith.constant 0 : i32
    %c0_i32_0 = arith.constant 0 : i32
    %c0_i32_1 = arith.constant 0 : i32
    return %c0_i32, %c0_i32_0 : i32, i32
  }
  func.func @transform_3(%arg0: i32, %arg1: i32) -> (i32, i32) {
    %c0_i32 = arith.constant 0 : i32
    %c0_i32_0 = arith.constant 0 : i32
    %c0_i32_1 = arith.constant 0 : i32
    return %c0_i32, %c0_i32_0 : i32, i32
  }
  func.func @transform_4(%arg0: i32, %arg1: i32) -> (i32, i32, i32) {
    %c0_i32 = arith.constant 0 : i32
    %c0_i32_0 = arith.constant 0 : i32
    %c0_i32_1 = arith.constant 0 : i32
    %c0_i32_2 = arith.constant 0 : i32
    return %c0_i32, %c0_i32_0, %c0_i32_1 : i32, i32, i32
  }
  func.func @transform_5(%arg0: i32, %arg1: i32) -> (i32, i32) {
    %c0_i32 = arith.constant 0 : i32
    %c0_i32_0 = arith.constant 0 : i32
    %c0_i32_1 = arith.constant 0 : i32
    return %c0_i32, %c0_i32_0 : i32, i32
  }
  func.func @transform_6(%arg0: i32, %arg1: i32) -> (i32, i32) {
    %c0_i32 = arith.constant 0 : i32
    %c0_i32_0 = arith.constant 0 : i32
    %c0_i32_1 = arith.constant 0 : i32
    return %c0_i32, %c0_i32_0 : i32, i32
  }
  func.func @transform_7(%arg0: i32, %arg1: i32) -> (i32, i32) {
    %c0_i32 = arith.constant 0 : i32
    %c0_i32_0 = arith.constant 0 : i32
    %c0_i32_1 = arith.constant 0 : i32
    return %c0_i32, %c0_i32_0 : i32, i32
  }
  func.func @transform_8(%arg0: i32, %arg1: i32) -> (i32, i32, i32) {
    %c0_i32 = arith.constant 0 : i32
    %c0_i32_0 = arith.constant 0 : i32
    return %arg0, %c0_i32, %arg1 : i32, i32, i32
  }
}

</mosaic_0001>

<llo_original>
// kernel: depth_seeding_network.1
$region0: #{depth_seeding_network.1}
  #allocation0 [shape = 'u32[]', space=smem, size = 0x4, offset = 0x4, fixed_abs, tag = 'smem constant byte address 0x4 - core index']
  #allocation1 [shape = 'u32[144,128]{1,0:T(1,128)}', space=vmem, size = 0x12000, scoped, tag = 'internal scratch']
  %s0 = inlined_call_operand.vmem [shape: bf16[2,1,432,32], index: 0, kind: input, shape index: {}]
  %s1 = inlined_call_operand.vmem [shape: f32[1,432,1], index: 1, kind: input, shape index: {}]
  %s2 = inlined_call_operand.vmem [shape: bf16[32,32], index: 2, kind: input, shape index: {}]
  %s3 = inlined_call_operand.vmem [shape: f32[1,32], index: 3, kind: input, shape index: {}]
  %s4 = inlined_call_operand.vmem [shape: bf16[3,96,32], index: 4, kind: input, shape index: {}]
  %s5 = inlined_call_operand.vmem [shape: f32[1,32], index: 5, kind: input, shape index: {}]
  %s6 = inlined_call_operand.vmem [shape: f32[8,32], index: 6, kind: input, shape index: {}]
  %s7 = inlined_call_operand.vmem [shape: f32[8,1], index: 7, kind: input, shape index: {}]
  %s8 = inlined_call_operand.vmem [shape: f32[2,8,256], index: 8, kind: output, shape index: {}]
  %s9 = sld [smem:[#allocation0]]
  $region65: #{depth_seeding_network.1} parent=0
    _
  %s11 = ssub.s32 1, %s9
  %s12 = scalar_select 0, %s11, %s9
  loop: start=0, step=1, limit=4
  $region2: #{depth_seeding_network.1} parent=0 // loop_pre_header
    _
  $region3: #{depth_seeding_network.1} parent=0 // loop_header
    %s14 = sphi 0, %s18
    %p15 = scmp.ge.s32.totalorder %s14, 4
    %s21 = sphi 0, %s33
    %s22 = sphi 0, %s29
    %s23 = sphi 0, %s21
    %s24 = sphi 0, %s22
    %s25 = sphi 0, %s23
    %s26 = sphi 0, %s24
    %s38 = sphi 0, %s40
    %s41 = sphi 0, %s38
    %s42 = sphi 0, %s41
    %s58 = sphi 0, %s42
    %s64 = sphi 0, %s66
    %s67 = sphi 0, %s64
    %s68 = sphi 0, %s67
    %s84 = sphi 0, %s68
    %s88 = sphi 0, %s88
    %s90 = sphi 0, %s88
    %s91 = sphi 0, %s90
    %s105 = sphi 0, %s91
    %s109 = sphi 0, %s109
    %s111 = sphi 0, %s109
    %s112 = sphi 0, %s111
    %s126 = sphi 0, %s112
    %s130 = sphi 0, %s130
    %s132 = sphi 0, %s130
    %s133 = sphi 0, %s132
    %s147 = sphi 0, %s133
    %s151 = sphi 0, %s151
    %s153 = sphi 0, %s151
    %s154 = sphi 0, %s153
    %s168 = sphi 0, %s154
    %s172 = sphi 0, %s172
    %s174 = sphi 0, %s172
    %s175 = sphi 0, %s174
    %s189 = sphi 0, %s175
    %s193 = sphi 0, %s193
    %s195 = sphi 0, %s193
    %s196 = sphi 0, %s195
    %s210 = sphi 0, %s196
    %s218 = sphi 0, %s220
    %s221 = sphi 0, %s218
    %s222 = sphi 0, %s221
    %s238 = sphi 0, %s222
  $region4: #{depth_seeding_network.1} parent=0 // loop_header_branch
    %17 = sbr.rel (%p15) target = $region8
  $region5: #{depth_seeding_network.1} parent=0 // loop_body
    %s19 = ssub.s32 %s14, 1
    %s20 = ssub.s32 %s14, 2
    %s27 = sadd.s32 1, %s22
    %p28 = scmp.ge.s32.totalorder %s27, 1
    %s29 = scalar_select %p28, 0, %s27
    %s30 = sadd.s32 1, %s21
    %s31 = scalar_select %p28, %s30, %s21
    %p32 = scmp.ge.s32.totalorder %s31, 2
    %s33 = scalar_select %p32, 0, %s31
    %s34 = ssub.s32 %s21, %s33
    %s35 = ssub.s32 %s22, %s29
    %s36 = sor.u32 %s34, %s35
    %p37 = scmp.eq.s32.totalorder %s36, 0
    %s39 = sadd.s32 %s38, 1
    %s40 = scalar_select %p37, %s38, %s39
    %p43 = pneg %p37
    %p44 = scmp.eq.s32.totalorder %s14, 1
    %p45 = por %p43, %p44
    %p46 = scmp.ne.s32.totalorder %s38, %s41
    %p47 = scmp.eq.s32.totalorder %s14, 0
    %p48 = por %p46, %p47
    %p49 = scmp.ne.s32.totalorder %s38, %s41
    %p50 = scmp.eq.s32.totalorder %s19, 1
    %p51 = por %p49, %p50
    %p52 = scmp.ne.s32.totalorder %s41, %s42
    %p53 = scmp.eq.s32.totalorder %s19, 0
    %p54 = por %p52, %p53
    %p55 = scmp.ne.s32.totalorder %s41, %s42
    %p56 = scmp.eq.s32.totalorder %s20, 1
    %p57 = por %p55, %p56
    %p59 = scmp.ne.s32.totalorder %s42, %s58
    %p60 = scmp.eq.s32.totalorder %s20, 0
    %p61 = por %p59, %p60
    %s62 = ssub.s32 %s22, %s29
    %p63 = scmp.eq.s32.totalorder %s62, 0
    %s65 = sadd.s32 %s64, 1
    %s66 = scalar_select %p63, %s64, %s65
    %p69 = pneg %p63
    %p70 = scmp.eq.s32.totalorder %s14, 1
    %p71 = por %p69, %p70
    %p72 = scmp.ne.s32.totalorder %s64, %s67
    %p73 = scmp.eq.s32.totalorder %s14, 0
    %p74 = por %p72, %p73
    %p75 = scmp.ne.s32.totalorder %s64, %s67
    %p76 = scmp.eq.s32.totalorder %s19, 1
    %p77 = por %p75, %p76
    %p78 = scmp.ne.s32.totalorder %s67, %s68
    %p79 = scmp.eq.s32.totalorder %s19, 0
    %p80 = por %p78, %p79
    %p81 = scmp.ne.s32.totalorder %s67, %s68
    %p82 = scmp.eq.s32.totalorder %s20, 1
    %p83 = por %p81, %p82
    %p85 = scmp.ne.s32.totalorder %s68, %s84
    %p86 = scmp.eq.s32.totalorder %s20, 0
    %p87 = por %p85, %p86
    %s89 = sadd.s32 %s88, 1
    %p92 = scmp.eq.s32.totalorder %s14, 1
    %p93 = scmp.ne.s32.totalorder %s88, %s90
    %p94 = scmp.eq.s32.totalorder %s14, 0
    %p95 = por %p93, %p94
    %p96 = scmp.ne.s32.totalorder %s88, %s90
    %p97 = scmp.eq.s32.totalorder %s19, 1
    %p98 = por %p96, %p97
    %p99 = scmp.ne.s32.totalorder %s90, %s91
    %p100 = scmp.eq.s32.totalorder %s19, 0
    %p101 = por %p99, %p100
    %p102 = scmp.ne.s32.totalorder %s90, %s91
    %p103 = scmp.eq.s32.totalorder %s20, 1
    %p104 = por %p102, %p103
    %p106 = scmp.ne.s32.totalorder %s91, %s105
    %p107 = scmp.eq.s32.totalorder %s20, 0
    %p108 = por %p106, %p107
    %s110 = sadd.s32 %s109, 1
    %p113 = scmp.eq.s32.totalorder %s14, 1
    %p114 = scmp.ne.s32.totalorder %s109, %s111
    %p115 = scmp.eq.s32.totalorder %s14, 0
    %p116 = por %p114, %p115
    %p117 = scmp.ne.s32.totalorder %s109, %s111
    %p118 = scmp.eq.s32.totalorder %s19, 1
    %p119 = por %p117, %p118
    %p120 = scmp.ne.s32.totalorder %s111, %s112
    %p121 = scmp.eq.s32.totalorder %s19, 0
    %p122 = por %p120, %p121
    %p123 = scmp.ne.s32.totalorder %s111, %s112
    %p124 = scmp.eq.s32.totalorder %s20, 1
    %p125 = por %p123, %p124
    %p127 = scmp.ne.s32.totalorder %s112, %s126
    %p128 = scmp.eq.s32.totalorder %s20, 0
    %p129 = por %p127, %p128
    %s131 = sadd.s32 %s130, 1
    %p134 = scmp.eq.s32.totalorder %s14, 1
    %p135 = scmp.ne.s32.totalorder %s130, %s132
    %p136 = scmp.eq.s32.totalorder %s14, 0
    %p137 = por %p135, %p136
    %p138 = scmp.ne.s32.totalorder %s130, %s132
    %p139 = scmp.eq.s32.totalorder %s19, 1
    %p140 = por %p138, %p139
    %p141 = scmp.ne.s32.totalorder %s132, %s133
    %p142 = scmp.eq.s32.totalorder %s19, 0
    %p143 = por %p141, %p142
    %p144 = scmp.ne.s32.totalorder %s132, %s133
    %p145 = scmp.eq.s32.totalorder %s20, 1
    %p146 = por %p144, %p145
    %p148 = scmp.ne.s32.totalorder %s133, %s147
    %p149 = scmp.eq.s32.totalorder %s20, 0
    %p150 = por %p148, %p149
    %s152 = sadd.s32 %s151, 1
    %p155 = scmp.eq.s32.totalorder %s14, 1
    %p156 = scmp.ne.s32.totalorder %s151, %s153
    %p157 = scmp.eq.s32.totalorder %s14, 0
    %p158 = por %p156, %p157
    %p159 = scmp.ne.s32.totalorder %s151, %s153
    %p160 = scmp.eq.s32.totalorder %s19, 1
    %p161 = por %p159, %p160
    %p162 = scmp.ne.s32.totalorder %s153, %s154
    %p163 = scmp.eq.s32.totalorder %s19, 0
    %p164 = por %p162, %p163
    %p165 = scmp.ne.s32.totalorder %s153, %s154
    %p166 = scmp.eq.s32.totalorder %s20, 1
    %p167 = por %p165, %p166
    %p169 = scmp.ne.s32.totalorder %s154, %s168
    %p170 = scmp.eq.s32.totalorder %s20, 0
    %p171 = por %p169, %p170
    %s173 = sadd.s32 %s172, 1
    %p176 = scmp.eq.s32.totalorder %s14, 1
    %p177 = scmp.ne.s32.totalorder %s172, %s174
    %p178 = scmp.eq.s32.totalorder %s14, 0
    %p179 = por %p177, %p178
    %p180 = scmp.ne.s32.totalorder %s172, %s174
    %p181 = scmp.eq.s32.totalorder %s19, 1
    %p182 = por %p180, %p181
    %p183 = scmp.ne.s32.totalorder %s174, %s175
    %p184 = scmp.eq.s32.totalorder %s19, 0
    %p185 = por %p183, %p184
    %p186 = scmp.ne.s32.totalorder %s174, %s175
    %p187 = scmp.eq.s32.totalorder %s20, 1
    %p188 = por %p186, %p187
    %p190 = scmp.ne.s32.totalorder %s175, %s189
    %p191 = scmp.eq.s32.totalorder %s20, 0
    %p192 = por %p190, %p191
    %s194 = sadd.s32 %s193, 1
    %p197 = scmp.eq.s32.totalorder %s14, 1
    %p198 = scmp.ne.s32.totalorder %s193, %s195
    %p199 = scmp.eq.s32.totalorder %s14, 0
    %p200 = por %p198, %p199
    %p201 = scmp.ne.s32.totalorder %s193, %s195
    %p202 = scmp.eq.s32.totalorder %s19, 1
    %p203 = por %p201, %p202
    %p204 = scmp.ne.s32.totalorder %s195, %s196
    %p205 = scmp.eq.s32.totalorder %s19, 0
    %p206 = por %p204, %p205
    %p207 = scmp.ne.s32.totalorder %s195, %s196
    %p208 = scmp.eq.s32.totalorder %s20, 1
    %p209 = por %p207, %p208
    %p211 = scmp.ne.s32.totalorder %s196, %s210
    %p212 = scmp.eq.s32.totalorder %s20, 0
    %p213 = por %p211, %p212
    %s214 = ssub.s32 %s21, %s33
    %s215 = ssub.s32 %s22, %s29
    %s216 = sor.u32 %s214, %s215
    %p217 = scmp.eq.s32.totalorder %s216, 0
    %s219 = sadd.s32 %s218, 1
    %s220 = scalar_select %p217, %s218, %s219
    %p223 = pneg %p217
    %p224 = scmp.eq.s32.totalorder %s14, 1
    %p225 = por %p223, %p224
    %p226 = scmp.ne.s32.totalorder %s218, %s221
    %p227 = scmp.eq.s32.totalorder %s14, 0
    %p228 = por %p226, %p227
    %p229 = scmp.ne.s32.totalorder %s218, %s221
    %p230 = scmp.eq.s32.totalorder %s19, 1
    %p231 = por %p229, %p230
    %p232 = scmp.ne.s32.totalorder %s221, %s222
    %p233 = scmp.eq.s32.totalorder %s19, 0
    %p234 = por %p232, %p233
    %p235 = scmp.ne.s32.totalorder %s221, %s222
    %p236 = scmp.eq.s32.totalorder %s20, 1
    %p237 = por %p235, %p236
    %p239 = scmp.ne.s32.totalorder %s222, %s238
    %p240 = scmp.eq.s32.totalorder %s20, 0
    %p241 = por %p239, %p240
    %p242 = scmp.le.s32.totalorder 1, %s14
    %p243 = scmp.lt.s32.totalorder %s14, 3
    %p244 = pnand %p242, %p243
    %p245 = pneg %p244
    // Predicated region
    $region9: #{depth_seeding_network.1} parent=5 // pred_check
      _
    $region10: #{depth_seeding_network.1} parent=5 // pred_check_branch
      %247 = sbr.rel (%p244) target = $region12
    $region11: #{depth_seeding_network.1} parent=5 // pred_region
      %s248 = ssub.s32 %s14, 1
      // Predicated region
      $region13: #{depth_seeding_network.1} parent=11 // pred_check
        %p249 = pneg %p80
      $region14: #{depth_seeding_network.1} parent=11 // pred_check_branch
        %251 = sbr.rel (%p249) target = $region16
      $region15: #{depth_seeding_network.1} parent=11 // pred_region
        %p252 = scmp.lt.s32.totalorder %s24, 0
        %s253 = scalar_select %p252, %s24, 0
        %s254 = smul.addr %s253, 54
        %s255 = smul.addr %s254, 8
        %s256 = scalar_lea.vmem %s1, %s255
      $region16: #{depth_seeding_network.1} parent=11 // pred_fallthru
        _
      // Predicated region
      $region17: #{depth_seeding_network.1} parent=11 // pred_check
        %p257 = pneg %p101
      $region18: #{depth_seeding_network.1} parent=11 // pred_check_branch
        %259 = sbr.rel (%p257) target = $region20
      $region19: #{depth_seeding_network.1} parent=11 // pred_region
        _
      $region20: #{depth_seeding_network.1} parent=11 // pred_fallthru
        _
      // Predicated region
      $region21: #{depth_seeding_network.1} parent=11 // pred_check
        %p260 = pneg %p122
      $region22: #{depth_seeding_network.1} parent=11 // pred_check_branch
        %262 = sbr.rel (%p260) target = $region24
      $region23: #{depth_seeding_network.1} parent=11 // pred_region
        _
      $region24: #{depth_seeding_network.1} parent=11 // pred_fallthru
        _
      // Predicated region
      $region25: #{depth_seeding_network.1} parent=11 // pred_check
        %p263 = pneg %p143
      $region26: #{depth_seeding_network.1} parent=11 // pred_check_branch
        %265 = sbr.rel (%p263) target = $region28
      $region27: #{depth_seeding_network.1} parent=11 // pred_region
        _
      $region28: #{depth_seeding_network.1} parent=11 // pred_fallthru
        _
      // Predicated region
      $region29: #{depth_seeding_network.1} parent=11 // pred_check
        %p266 = pneg %p164
      $region30: #{depth_seeding_network.1} parent=11 // pred_check_branch
        %268 = sbr.rel (%p266) target = $region32
      $region31: #{depth_seeding_network.1} parent=11 // pred_region
        _
      $region32: #{depth_seeding_network.1} parent=11 // pred_fallthru
        _
      // Predicated region
      $region33: #{depth_seeding_network.1} parent=11 // pred_check
        %p269 = pneg %p185
      $region34: #{depth_seeding_network.1} parent=11 // pred_check_branch
        %271 = sbr.rel (%p269) target = $region36
      $region35: #{depth_seeding_network.1} parent=11 // pred_region
        _
      $region36: #{depth_seeding_network.1} parent=11 // pred_fallthru
        _
      // Predicated region
      $region37: #{depth_seeding_network.1} parent=11 // pred_check
        %p272 = pneg %p206
      $region38: #{depth_seeding_network.1} parent=11 // pred_check_branch
        %274 = sbr.rel (%p272) target = $region40
      $region39: #{depth_seeding_network.1} parent=11 // pred_region
        _
      $region40: #{depth_seeding_network.1} parent=11 // pred_fallthru
        _
    $region12: #{depth_seeding_network.1} parent=5 // pred_fallthru
      _
    %p275 = scmp.lt.s32.totalorder %s14, 2
    // Predicated region
    $region41: #{depth_seeding_network.1} parent=5 // pred_check
      %p276 = pneg %p275
    $region42: #{depth_seeding_network.1} parent=5 // pred_check_branch
      %278 = sbr.rel (%p276) target = $region44
    $region43: #{depth_seeding_network.1} parent=5 // pred_region
      // Predicated region
      $region45: #{depth_seeding_network.1} parent=43 // pred_check
        %p279 = pneg %p48
      $region46: #{depth_seeding_network.1} parent=43 // pred_check_branch
        %281 = sbr.rel (%p279) target = $region48
      $region47: #{depth_seeding_network.1} parent=43 // pred_region
        %p282 = scmp.lt.s32.totalorder %s21, 1
        %s283 = scalar_select %p282, %s21, 1
        %p284 = scmp.lt.s32.totalorder %s22, 0
        %s285 = scalar_select %p284, %s22, 0
        %s286 = smul.addr %s285, 54
        %s287 = smul.addr %s283, 54
        %s288 = sadd.s32 %s286, %s287
        %s289 = smul.addr %s288, 4
        %s290 = scalar_lea.vmem %s0, %s289
      $region48: #{depth_seeding_network.1} parent=43 // pred_fallthru
        _
    $region44: #{depth_seeding_network.1} parent=5 // pred_fallthru
      _
    %p291 = scmp.le.s32.totalorder 1, %s14
    %p292 = scmp.lt.s32.totalorder %s14, 3
    %p293 = pnand %p291, %p292
    %p294 = pneg %p293
    // Predicated region
    $region49: #{depth_seeding_network.1} parent=5 // pred_check
      _
    $region50: #{depth_seeding_network.1} parent=5 // pred_check_branch
      %296 = sbr.rel (%p293) target = $region52
    $region51: #{depth_seeding_network.1} parent=5 // pred_region
      %s297 = ssub.s32 %s14, 1
      %p298 = scmp.lt.s32.totalorder %s23, 1
      %s299 = scalar_select %p298, %s23, 1
      %p300 = scmp.lt.s32.totalorder %s24, 0
      %s301 = scalar_select %p300, %s24, 0
      %s302 = smul.addr %s301, 54
      %s303 = smul.addr %s299, 54
      %s304 = sadd.s32 %s302, %s303
      %s305 = smul.addr %s304, 4
      %s306 = scalar_lea.vmem %s0, %s305
      %p307 = pneg %p54
      %p308 = pneg %p51
      %p309 = scmp.lt.s32.totalorder %s24, 0
      %s310 = scalar_select %p309, %s24, 0
      %s311 = smul.addr %s310, 54
      %s312 = smul.addr %s311, 8
      %s313 = scalar_lea.vmem %s1, %s312
      %p314 = pneg %p80
      %p315 = pneg %p77
      %p316 = pneg %p101
      %p317 = pneg %p98
      %p318 = pneg %p122
      %p319 = pneg %p119
      %p320 = pneg %p143
      %p321 = pneg %p140
      %p322 = pneg %p164
      %p323 = pneg %p161
      %p324 = pneg %p185
      %p325 = pneg %p182
      %p326 = pneg %p206
      %p327 = pneg %p203
      %p328 = pneg %p234
      %p329 = pneg %p231
      %s330 = smul.u32 2, %s24
      %p331 = scmp.lt.s32.totalorder %s23, 1
      %s332 = scalar_select %p331, %s23, 1
      %p333 = scmp.lt.s32.totalorder %s330, 1
      %s334 = scalar_select %p333, %s330, 1
      %s335 = smul.addr %s332, 2
      %s336 = sadd.s32 %s334, %s335
      %s337 = smul.addr %s336, 8
      %s338 = scalar_lea.vmem %s8, %s337
      %p339 = scmp.lt.s32.totalorder %s23, 1
      %s340 = scalar_select %p339, %s23, 1
      %p341 = scmp.lt.s32.totalorder %s24, 0
      %s342 = scalar_select %p341, %s24, 0
      %s343 = smul.addr %s342, 54
      %s344 = smul.addr %s340, 54
      %s345 = sadd.s32 %s343, %s344
      %s346 = smul.addr %s345, 4
      %s347 = scalar_lea.vmem %s0, %s346
      %p348 = scmp.lt.s32.totalorder %s24, 0
      %s349 = scalar_select %p348, %s24, 0
      %s350 = smul.addr %s349, 54
      %s351 = smul.addr %s350, 8
      %s352 = scalar_lea.vmem %s1, %s351
      %s353 = smul.u32 2, %s24
      %p354 = scmp.lt.s32.totalorder %s23, 1
      %s355 = scalar_select %p354, %s23, 1
      %p356 = scmp.lt.s32.totalorder %s353, 1
      %s357 = scalar_select %p356, %s353, 1
      %s358 = smul.addr %s355, 2
      %s359 = sadd.s32 %s357, %s358
      %s360 = smul.addr %s359, 8
      %s361 = scalar_lea.vmem %s8, %s360
      %s362 = smul.u32 2, %s24
      %v364 = vld [vmem:[%s347] sm:$0xf]
      %v365 = vld [vmem:[%s347 + $0x4] sm:$0xf]
      %v366 = vld [vmem:[%s347 + $0x8] sm:$0xf]
      %v367 = vld [vmem:[%s347 + $0xc] sm:$0xf]
      %v368 = vld [vmem:[%s347 + $0x10] sm:$0xf]
      %v369 = vld [vmem:[%s347 + $0x14] sm:$0xf]
      %v370 = vld [vmem:[%s347 + $0x18] sm:$0xf]
      %v371 = vld [vmem:[%s347 + $0x1c] sm:$0xf]
      %v372 = vld [vmem:[%s347 + $0x20] sm:$0xf]
      %v373 = vld [vmem:[%s347 + $0x24] sm:$0xf]
      %v374 = vld [vmem:[%s347 + $0x28] sm:$0xf]
      %v375 = vld [vmem:[%s347 + $0x2c] sm:$0xf]
      %v376 = vld [vmem:[%s347 + $0x30] sm:$0xf]
      %v377 = vld [vmem:[%s347 + $0x34] sm:$0xf]
      %v378 = vld [vmem:[%s347 + $0x38] sm:$0xf]
      %v379 = vld [vmem:[%s347 + $0x3c] sm:$0xf]
      %v380 = vld [vmem:[%s347 + $0x40] sm:$0xf]
      %v381 = vld [vmem:[%s347 + $0x44] sm:$0xf]
      %v382 = vld [vmem:[%s347 + $0x48] sm:$0xf]
      %v383 = vld [vmem:[%s347 + $0x4c] sm:$0xf]
      %v384 = vld [vmem:[%s347 + $0x50] sm:$0xf]
      %v385 = vld [vmem:[%s347 + $0x54] sm:$0xf]
      %v386 = vld [vmem:[%s347 + $0x58] sm:$0xf]
      %v387 = vld [vmem:[%s347 + $0x5c] sm:$0xf]
      %v388 = vld [vmem:[%s347 + $0x60] sm:$0xf]
      %v389 = vld [vmem:[%s347 + $0x64] sm:$0xf]
      %v390 = vld [vmem:[%s347 + $0x68] sm:$0xf]
      %v391 = vld [vmem:[%s347 + $0x6c] sm:$0xf]
      %v392 = vld [vmem:[%s347 + $0x70] sm:$0xf]
      %v393 = vld [vmem:[%s347 + $0x74] sm:$0xf]
      %v394 = vld [vmem:[%s347 + $0x78] sm:$0xf]
      %v395 = vld [vmem:[%s347 + $0x7c] sm:$0xf]
      %v396 = vld [vmem:[%s347 + $0x80] sm:$0xf]
      %v397 = vld [vmem:[%s347 + $0x84] sm:$0xf]
      %v398 = vld [vmem:[%s347 + $0x88] sm:$0xf]
      %v399 = vld [vmem:[%s347 + $0x8c] sm:$0xf]
      %v400 = vld [vmem:[%s347 + $0x90] sm:$0xf]
      %v401 = vld [vmem:[%s347 + $0x94] sm:$0xf]
      %v402 = vld [vmem:[%s347 + $0x98] sm:$0xf]
      %v403 = vld [vmem:[%s347 + $0x9c] sm:$0xf]
      %v404 = vld [vmem:[%s347 + $0xa0] sm:$0xf]
      %v405 = vld [vmem:[%s347 + $0xa4] sm:$0xf]
      %v406 = vld [vmem:[%s347 + $0xa8] sm:$0xf]
      %v407 = vld [vmem:[%s347 + $0xac] sm:$0xf]
      %v408 = vld [vmem:[%s347 + $0xb0] sm:$0xf]
      %v409 = vld [vmem:[%s347 + $0xb4] sm:$0xf]
      %v410 = vld [vmem:[%s347 + $0xb8] sm:$0xf]
      %v411 = vld [vmem:[%s347 + $0xbc] sm:$0xf]
      %v412 = vld [vmem:[%s347 + $0xc0] sm:$0xf]
      %v413 = vld [vmem:[%s347 + $0xc4] sm:$0xf]
      %v414 = vld [vmem:[%s347 + $0xc8] sm:$0xf]
      %v415 = vld [vmem:[%s347 + $0xcc] sm:$0xf]
      %v416 = vld [vmem:[%s347 + $0xd0] sm:$0xf]
      %v417 = vld [vmem:[%s347 + $0xd4] sm:$0xf]
      %v418 = vld [vmem:[%s2] sm:$0xf]
      %v419 = vld [vmem:[%s2 + $0x4] sm:$0xf]
      %v420 = vld [vmem:[%s2 + $0x8] sm:$0xf]
      %v421 = vld [vmem:[%s2 + $0xc] sm:$0xf]
      %v422 = vld [vmem:[%s3] sm:$0x1]
      %v424 = vlaneseq
      %v425 = vshrl.u32 %v424, 7
      %v426 = vsub.s32 0, %v425
      %v427 = vrot.slane %v422, %v426
      %v483 = vunpack.c.l.b16 %v364
      %v484 = vunpack.c.l.b16 %v365
      %v485 = vunpack.c.l.b16 %v366
      %v486 = vunpack.c.l.b16 %v367
      %v487 = vunpack.c.l.b16 %v368
      %v488 = vunpack.c.l.b16 %v369
      %v489 = vunpack.c.l.b16 %v370
      %v490 = vunpack.c.l.b16 %v371
      %v491 = vunpack.c.l.b16 %v372
      %v492 = vunpack.c.l.b16 %v373
      %v493 = vunpack.c.l.b16 %v374
      %v494 = vunpack.c.l.b16 %v375
      %v495 = vunpack.c.l.b16 %v376
      %v496 = vunpack.c.l.b16 %v377
      %v497 = vunpack.c.l.b16 %v378
      %v498 = vunpack.c.l.b16 %v379
      %v499 = vunpack.c.l.b16 %v380
      %v500 = vunpack.c.l.b16 %v381
      %v501 = vunpack.c.l.b16 %v382
      %v502 = vunpack.c.l.b16 %v383
      %v503 = vunpack.c.l.b16 %v384
      %v504 = vunpack.c.l.b16 %v385
      %v505 = vunpack.c.l.b16 %v386
      %v506 = vunpack.c.l.b16 %v387
      %v507 = vunpack.c.l.b16 %v388
      %v508 = vunpack.c.l.b16 %v389
      %v509 = vunpack.c.l.b16 %v390
      %v510 = vunpack.c.l.b16 %v391
      %v511 = vunpack.c.l.b16 %v392
      %v512 = vunpack.c.l.b16 %v393
      %v513 = vunpack.c.l.b16 %v394
      %v514 = vunpack.c.l.b16 %v395
      %v515 = vunpack.c.l.b16 %v396
      %v516 = vunpack.c.l.b16 %v397
      %v517 = vunpack.c.l.b16 %v398
      %v518 = vunpack.c.l.b16 %v399
      %v519 = vunpack.c.l.b16 %v400
      %v520 = vunpack.c.l.b16 %v401
      %v521 = vunpack.c.l.b16 %v402
      %v522 = vunpack.c.l.b16 %v403
      %v523 = vunpack.c.l.b16 %v404
      %v524 = vunpack.c.l.b16 %v405
      %v525 = vunpack.c.l.b16 %v406
      %v526 = vunpack.c.l.b16 %v407
      %v527 = vunpack.c.l.b16 %v408
      %v528 = vunpack.c.l.b16 %v409
      %v529 = vunpack.c.l.b16 %v410
      %v530 = vunpack.c.l.b16 %v411
      %v531 = vunpack.c.l.b16 %v412
      %v532 = vunpack.c.l.b16 %v413
      %v533 = vunpack.c.l.b16 %v414
      %v534 = vunpack.c.l.b16 %v415
      %v535 = vunpack.c.l.b16 %v416
      %v536 = vunpack.c.l.b16 %v417
      %v537 = vpack.c.b16 %v484, %v483
      %v538 = vpack.c.b16 %v486, %v485
      %v539 = vpack.c.b16 %v488, %v487
      %v540 = vpack.c.b16 %v490, %v489
      %v541 = vpack.c.b16 %v492, %v491
      %v542 = vpack.c.b16 %v494, %v493
      %v543 = vpack.c.b16 %v496, %v495
      %v544 = vpack.c.b16 %v498, %v497
      %v545 = vpack.c.b16 %v500, %v499
      %v546 = vpack.c.b16 %v502, %v501
      %v547 = vpack.c.b16 %v504, %v503
      %v548 = vpack.c.b16 %v506, %v505
      %v549 = vpack.c.b16 %v508, %v507
      %v550 = vpack.c.b16 %v510, %v509
      %v551 = vpack.c.b16 %v512, %v511
      %v552 = vpack.c.b16 %v514, %v513
      %v553 = vpack.c.b16 %v516, %v515
      %v554 = vpack.c.b16 %v518, %v517
      %v555 = vpack.c.b16 %v520, %v519
      %v556 = vpack.c.b16 %v522, %v521
      %v557 = vpack.c.b16 %v524, %v523
      %v558 = vpack.c.b16 %v526, %v525
      %v559 = vpack.c.b16 %v528, %v527
      %v560 = vpack.c.b16 %v530, %v529
      %v561 = vpack.c.b16 %v532, %v531
      %v562 = vpack.c.b16 %v534, %v533
      %v563 = vpack.c.b16 %v536, %v535
      %v568 = vunpack.c.l.b16 %v418
      %v569 = vunpack.c.l.b16 %v419
      %v570 = vunpack.c.l.b16 %v420
      %v571 = vunpack.c.l.b16 %v421
      %v572 = vpack.c.b16 %v569, %v568
      %v573 = vpack.c.b16 %v571, %v570
      %vm576 = vcmask 261120
      %v578 = vsel %vm576, %v537, 0
      %v581 = vsel %vm576, %v538, 0
      %v584 = vsel %vm576, %v539, 0
      %v587 = vsel %vm576, %v540, 0
      %v590 = vsel %vm576, %v541, 0
      %v593 = vsel %vm576, %v542, 0
      %v596 = vsel %vm576, %v543, 0
      %v599 = vsel %vm576, %v544, 0
      %v602 = vsel %vm576, %v545, 0
      %v605 = vsel %vm576, %v546, 0
      %v608 = vsel %vm576, %v547, 0
      %v611 = vsel %vm576, %v548, 0
      %v614 = vsel %vm576, %v549, 0
      %v617 = vsel %vm576, %v550, 0
      %v620 = vsel %vm576, %v551, 0
      %v623 = vsel %vm576, %v552, 0
      %v626 = vsel %vm576, %v553, 0
      %v629 = vsel %vm576, %v554, 0
      %v632 = vsel %vm576, %v555, 0
      %v635 = vsel %vm576, %v556, 0
      %v638 = vsel %vm576, %v557, 0
      %v641 = vsel %vm576, %v558, 0
      %v644 = vsel %vm576, %v559, 0
      %v647 = vsel %vm576, %v560, 0
      %v650 = vsel %vm576, %v561, 0
      %v653 = vsel %vm576, %v562, 0
      %v656 = vsel %vm576, %v563, 0
      %658 = vmatprep.subr.bf16.mxu0 0
      %659 = vmatpush1.bf16.msra.mxu0 0
      %660 = vmatprep.subr.bf16.mxu0 0
      %661 = vmatpush1.bf16.msra.mxu0 0
      %662 = vmatprep.subr.bf16.mxu0 0
      %663 = vmatpush1.bf16.msra.mxu0 0
      %664 = vmatprep.subr.bf16.mxu0 0
      %665 = vmatpush1.bf16.msra.mxu0 0
      %666 = vmatprep.subr.bf16.mxu0 0
      %667 = vmatpush1.bf16.msra.mxu0 0
      %668 = vmatprep.subr.bf16.mxu0 0
      %669 = vmatpush1.bf16.msra.mxu0 0
      %670 = vmatprep.subr.bf16.mxu0 0
      %671 = vmatpush1.bf16.msra.mxu0 %v573
      %672 = vmatprep.subr.bf16.mxu0 0
      %673 = vmatpush1.bf16.msra.mxu0 %v572
      %674 = vmatprep.subr.bf16.mxu0 0
      %675 = vmatpush2.bf16.msra.mxu0 0
      %676 = vmatprep.subr.bf16.mxu0 0
      %677 = vmatpush2.bf16.msra.mxu0 0
      %678 = vmatprep.subr.bf16.mxu0 0
      %679 = vmatpush2.bf16.msra.mxu0 0
      %680 = vmatprep.subr.bf16.mxu0 0
      %681 = vmatpush2.bf16.msra.mxu0 0
      %682 = vmatprep.subr.bf16.mxu0 0
      %683 = vmatpush2.bf16.msra.mxu0 0
      %684 = vmatprep.subr.bf16.mxu0 0
      %685 = vmatpush2.bf16.msra.mxu0 0
      %686 = vmatprep.subr.bf16.mxu0 0
      %687 = vmatpush2.bf16.msra.mxu0 0
      %688 = vmatprep.subr.bf16.mxu0 0
      %689 = vmatpush2.bf16.msra.mxu0 0
      %690 = vmatprep.mubr.bf16.mxu0 0
      %691 = vmatmul.mubr.bf16.gmra.mxu0 %v578
      %v692 = vpop.f32.mrf.mxu0
      %v693 = vadd.f32 %v427, %v692
      %v694 = vpop.f32.mrf.mxu0
      %v695 = vpop.f32.mrf.mxu0
      %v696 = vadd.f32 %v427, %v695
      %v697 = vpop.f32.mrf.mxu0
      %698 = vmatprep.mubr.bf16.mxu0 0
      %699 = vmatmul.mubr.bf16.gmra.mxu0 %v581
      %v700 = vpop.f32.mrf.mxu0
      %v701 = vadd.f32 %v427, %v700
      %v702 = vpop.f32.mrf.mxu0
      %v703 = vpop.f32.mrf.mxu0
      %v704 = vadd.f32 %v427, %v703
      %v705 = vpop.f32.mrf.mxu0
      %706 = vmatprep.mubr.bf16.mxu0 0
      %707 = vmatmul.mubr.bf16.gmra.mxu0 %v584
      %v708 = vpop.f32.mrf.mxu0
      %v709 = vadd.f32 %v427, %v708
      %v710 = vpop.f32.mrf.mxu0
      %v711 = vpop.f32.mrf.mxu0
      %v712 = vadd.f32 %v427, %v711
      %v713 = vpop.f32.mrf.mxu0
      %714 = vmatprep.mubr.bf16.mxu0 0
      %715 = vmatmul.mubr.bf16.gmra.mxu0 %v587
      %v716 = vpop.f32.mrf.mxu0
      %v717 = vadd.f32 %v427, %v716
      %v718 = vpop.f32.mrf.mxu0
      %v719 = vpop.f32.mrf.mxu0
      %v720 = vadd.f32 %v427, %v719
      %v721 = vpop.f32.mrf.mxu0
      %722 = vmatprep.mubr.bf16.mxu0 0
      %723 = vmatmul.mubr.bf16.gmra.mxu0 %v590
      %v724 = vpop.f32.mrf.mxu0
      %v725 = vadd.f32 %v427, %v724
      %v726 = vpop.f32.mrf.mxu0
      %v727 = vpop.f32.mrf.mxu0
      %v728 = vadd.f32 %v427, %v727
      %v729 = vpop.f32.mrf.mxu0
      %730 = vmatprep.mubr.bf16.mxu0 0
      %731 = vmatmul.mubr.bf16.gmra.mxu0 %v593
      %v732 = vpop.f32.mrf.mxu0
      %v733 = vadd.f32 %v427, %v732
      %v734 = vpop.f32.mrf.mxu0
      %v735 = vpop.f32.mrf.mxu0
      %v736 = vadd.f32 %v427, %v735
      %v737 = vpop.f32.mrf.mxu0
      %738 = vmatprep.mubr.bf16.mxu0 0
      %739 = vmatmul.mubr.bf16.gmra.mxu0 %v596
      %v740 = vpop.f32.mrf.mxu0
      %v741 = vadd.f32 %v427, %v740
      %v742 = vpop.f32.mrf.mxu0
      %v743 = vpop.f32.mrf.mxu0
      %v744 = vadd.f32 %v427, %v743
      %v745 = vpop.f32.mrf.mxu0
      %746 = vmatprep.mubr.bf16.mxu0 0
      %747 = vmatmul.mubr.bf16.gmra.mxu0 %v599
      %v748 = vpop.f32.mrf.mxu0
      %v749 = vadd.f32 %v427, %v748
      %v750 = vpop.f32.mrf.mxu0
      %v751 = vpop.f32.mrf.mxu0
      %v752 = vadd.f32 %v427, %v751
      %v753 = vpop.f32.mrf.mxu0
      %754 = vmatprep.mubr.bf16.mxu0 0
      %755 = vmatmul.mubr.bf16.gmra.mxu0 %v602
      %v756 = vpop.f32.mrf.mxu0
      %v757 = vadd.f32 %v427, %v756
      %v758 = vpop.f32.mrf.mxu0
      %v759 = vpop.f32.mrf.mxu0
      %v760 = vadd.f32 %v427, %v759
      %v761 = vpop.f32.mrf.mxu0
      %762 = vmatprep.mubr.bf16.mxu0 0
      %763 = vmatmul.mubr.bf16.gmra.mxu0 %v605
      %v764 = vpop.f32.mrf.mxu0
      %v765 = vadd.f32 %v427, %v764
      %v766 = vpop.f32.mrf.mxu0
      %v767 = vpop.f32.mrf.mxu0
      %v768 = vadd.f32 %v427, %v767
      %v769 = vpop.f32.mrf.mxu0
      %770 = vmatprep.mubr.bf16.mxu0 0
      %771 = vmatmul.mubr.bf16.gmra.mxu0 %v608
      %v772 = vpop.f32.mrf.mxu0
      %v773 = vadd.f32 %v427, %v772
      %v774 = vpop.f32.mrf.mxu0
      %v775 = vpop.f32.mrf.mxu0
      %v776 = vadd.f32 %v427, %v775
      %v777 = vpop.f32.mrf.mxu0
      %778 = vmatprep.mubr.bf16.mxu0 0
      %779 = vmatmul.mubr.bf16.gmra.mxu0 %v611
      %v780 = vpop.f32.mrf.mxu0
      %v781 = vadd.f32 %v427, %v780
      %v782 = vpop.f32.mrf.mxu0
      %v783 = vpop.f32.mrf.mxu0
      %v784 = vadd.f32 %v427, %v783
      %v785 = vpop.f32.mrf.mxu0
      %786 = vmatprep.mubr.bf16.mxu0 0
      %787 = vmatmul.mubr.bf16.gmra.mxu0 %v614
      %v788 = vpop.f32.mrf.mxu0
      %v789 = vadd.f32 %v427, %v788
      %v790 = vpop.f32.mrf.mxu0
      %v791 = vpop.f32.mrf.mxu0
      %v792 = vadd.f32 %v427, %v791
      %v793 = vpop.f32.mrf.mxu0
      %794 = vmatprep.mubr.bf16.mxu0 0
      %795 = vmatmul.mubr.bf16.gmra.mxu0 %v617
      %v796 = vpop.f32.mrf.mxu0
      %v797 = vadd.f32 %v427, %v796
      %v798 = vpop.f32.mrf.mxu0
      %v799 = vpop.f32.mrf.mxu0
      %v800 = vadd.f32 %v427, %v799
      %v801 = vpop.f32.mrf.mxu0
      %802 = vmatprep.mubr.bf16.mxu0 0
      %803 = vmatmul.mubr.bf16.gmra.mxu0 %v620
      %v804 = vpop.f32.mrf.mxu0
      %v805 = vadd.f32 %v427, %v804
      %v806 = vpop.f32.mrf.mxu0
      %v807 = vpop.f32.mrf.mxu0
      %v808 = vadd.f32 %v427, %v807
      %v809 = vpop.f32.mrf.mxu0
      %810 = vmatprep.mubr.bf16.mxu0 0
      %811 = vmatmul.mubr.bf16.gmra.mxu0 %v623
      %v812 = vpop.f32.mrf.mxu0
      %v813 = vadd.f32 %v427, %v812
      %v814 = vpop.f32.mrf.mxu0
      %v815 = vpop.f32.mrf.mxu0
      %v816 = vadd.f32 %v427, %v815
      %v817 = vpop.f32.mrf.mxu0
      %818 = vmatprep.mubr.bf16.mxu0 0
      %819 = vmatmul.mubr.bf16.gmra.mxu0 %v626
      %v820 = vpop.f32.mrf.mxu0
      %v821 = vadd.f32 %v427, %v820
      %v822 = vpop.f32.mrf.mxu0
      %v823 = vpop.f32.mrf.mxu0
      %v824 = vadd.f32 %v427, %v823
      %v825 = vpop.f32.mrf.mxu0
      %826 = vmatprep.mubr.bf16.mxu0 0
      %827 = vmatmul.mubr.bf16.gmra.mxu0 %v629
      %v828 = vpop.f32.mrf.mxu0
      %v829 = vadd.f32 %v427, %v828
      %v830 = vpop.f32.mrf.mxu0
      %v831 = vpop.f32.mrf.mxu0
      %v832 = vadd.f32 %v427, %v831
      %v833 = vpop.f32.mrf.mxu0
      %834 = vmatprep.mubr.bf16.mxu0 0
      %835 = vmatmul.mubr.bf16.gmra.mxu0 %v632
      %v836 = vpop.f32.mrf.mxu0
      %v837 = vadd.f32 %v427, %v836
      %v838 = vpop.f32.mrf.mxu0
      %v839 = vpop.f32.mrf.mxu0
      %v840 = vadd.f32 %v427, %v839
      %v841 = vpop.f32.mrf.mxu0
      %842 = vmatprep.mubr.bf16.mxu0 0
      %843 = vmatmul.mubr.bf16.gmra.mxu0 %v635
      %v844 = vpop.f32.mrf.mxu0
      %v845 = vadd.f32 %v427, %v844
      %v846 = vpop.f32.mrf.mxu0
      %v847 = vpop.f32.mrf.mxu0
      %v848 = vadd.f32 %v427, %v847
      %v849 = vpop.f32.mrf.mxu0
      %850 = vmatprep.mubr.bf16.mxu0 0
      %851 = vmatmul.mubr.bf16.gmra.mxu0 %v638
      %v852 = vpop.f32.mrf.mxu0
      %v853 = vadd.f32 %v427, %v852
      %v854 = vpop.f32.mrf.mxu0
      %v855 = vpop.f32.mrf.mxu0
      %v856 = vadd.f32 %v427, %v855
      %v857 = vpop.f32.mrf.mxu0
      %858 = vmatprep.mubr.bf16.mxu0 0
      %859 = vmatmul.mubr.bf16.gmra.mxu0 %v641
      %v860 = vpop.f32.mrf.mxu0
      %v861 = vadd.f32 %v427, %v860
      %v862 = vpop.f32.mrf.mxu0
      %v863 = vpop.f32.mrf.mxu0
      %v864 = vadd.f32 %v427, %v863
      %v865 = vpop.f32.mrf.mxu0
      %866 = vmatprep.mubr.bf16.mxu0 0
      %867 = vmatmul.mubr.bf16.gmra.mxu0 %v644
      %v868 = vpop.f32.mrf.mxu0
      %v869 = vadd.f32 %v427, %v868
      %v870 = vpop.f32.mrf.mxu0
      %v871 = vpop.f32.mrf.mxu0
      %v872 = vadd.f32 %v427, %v871
      %v873 = vpop.f32.mrf.mxu0
      %874 = vmatprep.mubr.bf16.mxu0 0
      %875 = vmatmul.mubr.bf16.gmra.mxu0 %v647
      %v876 = vpop.f32.mrf.mxu0
      %v877 = vadd.f32 %v427, %v876
      %v878 = vpop.f32.mrf.mxu0
      %v879 = vpop.f32.mrf.mxu0
      %v880 = vadd.f32 %v427, %v879
      %v881 = vpop.f32.mrf.mxu0
      %882 = vmatprep.mubr.bf16.mxu0 0
      %883 = vmatmul.mubr.bf16.gmra.mxu0 %v650
      %v884 = vpop.f32.mrf.mxu0
      %v885 = vadd.f32 %v427, %v884
      %v886 = vpop.f32.mrf.mxu0
      %v887 = vpop.f32.mrf.mxu0
      %v888 = vadd.f32 %v427, %v887
      %v889 = vpop.f32.mrf.mxu0
      %890 = vmatprep.mubr.bf16.mxu0 0
      %891 = vmatmul.mubr.bf16.gmra.mxu0 %v653
      %v892 = vpop.f32.mrf.mxu0
      %v893 = vadd.f32 %v427, %v892
      %v894 = vpop.f32.mrf.mxu0
      %v895 = vpop.f32.mrf.mxu0
      %v896 = vadd.f32 %v427, %v895
      %v897 = vpop.f32.mrf.mxu0
      %898 = vmatprep.mubr.bf16.mxu0 0
      %899 = vmatmul.mubr.bf16.gmra.mxu0 %v656
      %v900 = vpop.f32.mrf.mxu0
      %v901 = vadd.f32 %v427, %v900
      %v902 = vpop.f32.mrf.mxu0
      %v903 = vpop.f32.mrf.mxu0
      %v904 = vadd.f32 %v427, %v903
      %v905 = vpop.f32.mrf.mxu0
      %906 = vdwg.mxu0
      %v907 = vmax.f32 %v693, 0.0
      %v908 = vmax.f32 %v696, 0.0
      %v909 = vmax.f32 %v701, 0.0
      %v910 = vmax.f32 %v704, 0.0
      %v911 = vmax.f32 %v709, 0.0
      %v912 = vmax.f32 %v712, 0.0
      %v913 = vmax.f32 %v717, 0.0
      %v914 = vmax.f32 %v720, 0.0
      %v915 = vmax.f32 %v725, 0.0
      %v916 = vmax.f32 %v728, 0.0
      %v917 = vmax.f32 %v733, 0.0
      %v918 = vmax.f32 %v736, 0.0
      %v919 = vmax.f32 %v741, 0.0
      %v920 = vmax.f32 %v744, 0.0
      %v921 = vmax.f32 %v749, 0.0
      %v922 = vmax.f32 %v752, 0.0
      %v923 = vmax.f32 %v757, 0.0
      %v924 = vmax.f32 %v760, 0.0
      %v925 = vmax.f32 %v765, 0.0
      %v926 = vmax.f32 %v768, 0.0
      %v927 = vmax.f32 %v773, 0.0
      %v928 = vmax.f32 %v776, 0.0
      %v929 = vmax.f32 %v781, 0.0
      %v930 = vmax.f32 %v784, 0.0
      %v931 = vmax.f32 %v789, 0.0
      %v932 = vmax.f32 %v792, 0.0
      %v933 = vmax.f32 %v797, 0.0
      %v934 = vmax.f32 %v800, 0.0
      %v935 = vmax.f32 %v805, 0.0
      %v936 = vmax.f32 %v808, 0.0
      %v937 = vmax.f32 %v813, 0.0
      %v938 = vmax.f32 %v816, 0.0
      %v939 = vmax.f32 %v821, 0.0
      %v940 = vmax.f32 %v824, 0.0
      %v941 = vmax.f32 %v829, 0.0
      %v942 = vmax.f32 %v832, 0.0
      %v943 = vmax.f32 %v837, 0.0
      %v944 = vmax.f32 %v840, 0.0
      %v945 = vmax.f32 %v845, 0.0
      %v946 = vmax.f32 %v848, 0.0
      %v947 = vmax.f32 %v853, 0.0
      %v948 = vmax.f32 %v856, 0.0
      %v949 = vmax.f32 %v861, 0.0
      %v950 = vmax.f32 %v864, 0.0
      %v951 = vmax.f32 %v869, 0.0
      %v952 = vmax.f32 %v872, 0.0
      %v953 = vmax.f32 %v877, 0.0
      %v954 = vmax.f32 %v880, 0.0
      %v955 = vmax.f32 %v885, 0.0
      %v956 = vmax.f32 %v888, 0.0
      %v957 = vmax.f32 %v893, 0.0
      %v958 = vmax.f32 %v896, 0.0
      %v959 = vmax.f32 %v901, 0.0
      %v960 = vmax.f32 %v904, 0.0
      %v961 = vld [vmem:[%s352] sm:$0xff]
      %v962 = vld [vmem:[%s352 + $0x8] sm:$0xff]
      %v963 = vld [vmem:[%s352 + $0x10] sm:$0xff]
      %v964 = vld [vmem:[%s352 + $0x18] sm:$0xff]
      %v965 = vld [vmem:[%s352 + $0x20] sm:$0xff]
      %v966 = vld [vmem:[%s352 + $0x28] sm:$0xff]
      %v967 = vld [vmem:[%s352 + $0x30] sm:$0xff]
      %v968 = vld [vmem:[%s352 + $0x38] sm:$0xff]
      %v969 = vld [vmem:[%s352 + $0x40] sm:$0xff]
      %v970 = vld [vmem:[%s352 + $0x48] sm:$0xff]
      %v971 = vld [vmem:[%s352 + $0x50] sm:$0xff]
      %v972 = vld [vmem:[%s352 + $0x58] sm:$0xff]
      %v973 = vld [vmem:[%s352 + $0x60] sm:$0xff]
      %v974 = vld [vmem:[%s352 + $0x68] sm:$0xff]
      %v975 = vld [vmem:[%s352 + $0x70] sm:$0xff]
      %v976 = vld [vmem:[%s352 + $0x78] sm:$0xff]
      %v977 = vld [vmem:[%s352 + $0x80] sm:$0xff]
      %v978 = vld [vmem:[%s352 + $0x88] sm:$0xff]
      %v979 = vld [vmem:[%s352 + $0x90] sm:$0xff]
      %v980 = vld [vmem:[%s352 + $0x98] sm:$0xff]
      %v981 = vld [vmem:[%s352 + $0xa0] sm:$0xff]
      %v982 = vld [vmem:[%s352 + $0xa8] sm:$0xff]
      %v983 = vld [vmem:[%s352 + $0xb0] sm:$0xff]
      %v984 = vld [vmem:[%s352 + $0xb8] sm:$0xff]
      %v985 = vld [vmem:[%s352 + $0xc0] sm:$0xff]
      %v986 = vld [vmem:[%s352 + $0xc8] sm:$0xff]
      %v987 = vld [vmem:[%s352 + $0xd0] sm:$0xff]
      %v988 = vld [vmem:[%s352 + $0xd8] sm:$0xff]
      %v989 = vld [vmem:[%s352 + $0xe0] sm:$0xff]
      %v990 = vld [vmem:[%s352 + $0xe8] sm:$0xff]
      %v991 = vld [vmem:[%s352 + $0xf0] sm:$0xff]
      %v992 = vld [vmem:[%s352 + $0xf8] sm:$0xff]
      %v993 = vld [vmem:[%s352 + $0x100] sm:$0xff]
      %v994 = vld [vmem:[%s352 + $0x108] sm:$0xff]
      %v995 = vld [vmem:[%s352 + $0x110] sm:$0xff]
      %v996 = vld [vmem:[%s352 + $0x118] sm:$0xff]
      %v997 = vld [vmem:[%s352 + $0x120] sm:$0xff]
      %v998 = vld [vmem:[%s352 + $0x128] sm:$0xff]
      %v999 = vld [vmem:[%s352 + $0x130] sm:$0xff]
      %v1000 = vld [vmem:[%s352 + $0x138] sm:$0xff]
      %v1001 = vld [vmem:[%s352 + $0x140] sm:$0xff]
      %v1002 = vld [vmem:[%s352 + $0x148] sm:$0xff]
      %v1003 = vld [vmem:[%s352 + $0x150] sm:$0xff]
      %v1004 = vld [vmem:[%s352 + $0x158] sm:$0xff]
      %v1005 = vld [vmem:[%s352 + $0x160] sm:$0xff]
      %v1006 = vld [vmem:[%s352 + $0x168] sm:$0xff]
      %v1007 = vld [vmem:[%s352 + $0x170] sm:$0xff]
      %v1008 = vld [vmem:[%s352 + $0x178] sm:$0xff]
      %v1009 = vld [vmem:[%s352 + $0x180] sm:$0xff]
      %v1010 = vld [vmem:[%s352 + $0x188] sm:$0xff]
      %v1011 = vld [vmem:[%s352 + $0x190] sm:$0xff]
      %v1012 = vld [vmem:[%s352 + $0x198] sm:$0xff]
      %v1013 = vld [vmem:[%s352 + $0x1a0] sm:$0xff]
      %v1014 = vld [vmem:[%s352 + $0x1a8] sm:$0xff]
      %1016 = vset.pattern.permute.xlu0 0
      %1017 = vperm.xlu0 %1016, %v961
      %v1018 = vpop.permute.xlu0 %1017
      %1021 = vset.pattern.permute.xlu0 0
      %1022 = vperm.xlu0 %1021, %v962
      %v1023 = vpop.permute.xlu0 %1022
      %1026 = vset.pattern.permute.xlu0 0
      %1027 = vperm.xlu0 %1026, %v963
      %v1028 = vpop.permute.xlu0 %1027
      %1031 = vset.pattern.permute.xlu0 0
      %1032 = vperm.xlu0 %1031, %v964
      %v1033 = vpop.permute.xlu0 %1032
      %1036 = vset.pattern.permute.xlu0 0
      %1037 = vperm.xlu0 %1036, %v965
      %v1038 = vpop.permute.xlu0 %1037
      %1041 = vset.pattern.permute.xlu0 0
      %1042 = vperm.xlu0 %1041, %v966
      %v1043 = vpop.permute.xlu0 %1042
      %1046 = vset.pattern.permute.xlu0 0
      %1047 = vperm.xlu0 %1046, %v967
      %v1048 = vpop.permute.xlu0 %1047
      %1051 = vset.pattern.permute.xlu0 0
      %1052 = vperm.xlu0 %1051, %v968
      %v1053 = vpop.permute.xlu0 %1052
      %1056 = vset.pattern.permute.xlu0 0
      %1057 = vperm.xlu0 %1056, %v969
      %v1058 = vpop.permute.xlu0 %1057
      %1061 = vset.pattern.permute.xlu0 0
      %1062 = vperm.xlu0 %1061, %v970
      %v1063 = vpop.permute.xlu0 %1062
      %1066 = vset.pattern.permute.xlu0 0
      %1067 = vperm.xlu0 %1066, %v971
      %v1068 = vpop.permute.xlu0 %1067
      %1071 = vset.pattern.permute.xlu0 0
      %1072 = vperm.xlu0 %1071, %v972
      %v1073 = vpop.permute.xlu0 %1072
      %1076 = vset.pattern.permute.xlu0 0
      %1077 = vperm.xlu0 %1076, %v973
      %v1078 = vpop.permute.xlu0 %1077
      %1081 = vset.pattern.permute.xlu0 0
      %1082 = vperm.xlu0 %1081, %v974
      %v1083 = vpop.permute.xlu0 %1082
      %1086 = vset.pattern.permute.xlu0 0
      %1087 = vperm.xlu0 %1086, %v975
      %v1088 = vpop.permute.xlu0 %1087
      %1091 = vset.pattern.permute.xlu0 0
      %1092 = vperm.xlu0 %1091, %v976
      %v1093 = vpop.permute.xlu0 %1092
      %1096 = vset.pattern.permute.xlu0 0
      %1097 = vperm.xlu0 %1096, %v977
      %v1098 = vpop.permute.xlu0 %1097
      %1101 = vset.pattern.permute.xlu0 0
      %1102 = vperm.xlu0 %1101, %v978
      %v1103 = vpop.permute.xlu0 %1102
      %1106 = vset.pattern.permute.xlu0 0
      %1107 = vperm.xlu0 %1106, %v979
      %v1108 = vpop.permute.xlu0 %1107
      %1111 = vset.pattern.permute.xlu0 0
      %1112 = vperm.xlu0 %1111, %v980
      %v1113 = vpop.permute.xlu0 %1112
      %1116 = vset.pattern.permute.xlu0 0
      %1117 = vperm.xlu0 %1116, %v981
      %v1118 = vpop.permute.xlu0 %1117
      %1121 = vset.pattern.permute.xlu0 0
      %1122 = vperm.xlu0 %1121, %v982
      %v1123 = vpop.permute.xlu0 %1122
      %1126 = vset.pattern.permute.xlu0 0
      %1127 = vperm.xlu0 %1126, %v983
      %v1128 = vpop.permute.xlu0 %1127
      %1131 = vset.pattern.permute.xlu0 0
      %1132 = vperm.xlu0 %1131, %v984
      %v1133 = vpop.permute.xlu0 %1132
      %1136 = vset.pattern.permute.xlu0 0
      %1137 = vperm.xlu0 %1136, %v985
      %v1138 = vpop.permute.xlu0 %1137
      %1141 = vset.pattern.permute.xlu0 0
      %1142 = vperm.xlu0 %1141, %v986
      %v1143 = vpop.permute.xlu0 %1142
      %1146 = vset.pattern.permute.xlu0 0
      %1147 = vperm.xlu0 %1146, %v987
      %v1148 = vpop.permute.xlu0 %1147
      %1151 = vset.pattern.permute.xlu0 0
      %1152 = vperm.xlu0 %1151, %v988
      %v1153 = vpop.permute.xlu0 %1152
      %1156 = vset.pattern.permute.xlu0 0
      %1157 = vperm.xlu0 %1156, %v989
      %v1158 = vpop.permute.xlu0 %1157
      %1161 = vset.pattern.permute.xlu0 0
      %1162 = vperm.xlu0 %1161, %v990
      %v1163 = vpop.permute.xlu0 %1162
      %1166 = vset.pattern.permute.xlu0 0
      %1167 = vperm.xlu0 %1166, %v991
      %v1168 = vpop.permute.xlu0 %1167
      %1171 = vset.pattern.permute.xlu0 0
      %1172 = vperm.xlu0 %1171, %v992
      %v1173 = vpop.permute.xlu0 %1172
      %1176 = vset.pattern.permute.xlu0 0
      %1177 = vperm.xlu0 %1176, %v993
      %v1178 = vpop.permute.xlu0 %1177
      %1181 = vset.pattern.permute.xlu0 0
      %1182 = vperm.xlu0 %1181, %v994
      %v1183 = vpop.permute.xlu0 %1182
      %1186 = vset.pattern.permute.xlu0 0
      %1187 = vperm.xlu0 %1186, %v995
      %v1188 = vpop.permute.xlu0 %1187
      %1191 = vset.pattern.permute.xlu0 0
      %1192 = vperm.xlu0 %1191, %v996
      %v1193 = vpop.permute.xlu0 %1192
      %1196 = vset.pattern.permute.xlu0 0
      %1197 = vperm.xlu0 %1196, %v997
      %v1198 = vpop.permute.xlu0 %1197
      %1201 = vset.pattern.permute.xlu0 0
      %1202 = vperm.xlu0 %1201, %v998
      %v1203 = vpop.permute.xlu0 %1202
      %1206 = vset.pattern.permute.xlu0 0
      %1207 = vperm.xlu0 %1206, %v999
      %v1208 = vpop.permute.xlu0 %1207
      %1211 = vset.pattern.permute.xlu0 0
      %1212 = vperm.xlu0 %1211, %v1000
      %v1213 = vpop.permute.xlu0 %1212
      %1216 = vset.pattern.permute.xlu0 0
      %1217 = vperm.xlu0 %1216, %v1001
      %v1218 = vpop.permute.xlu0 %1217
      %1221 = vset.pattern.permute.xlu0 0
      %1222 = vperm.xlu0 %1221, %v1002
      %v1223 = vpop.permute.xlu0 %1222
      %1226 = vset.pattern.permute.xlu0 0
      %1227 = vperm.xlu0 %1226, %v1003
      %v1228 = vpop.permute.xlu0 %1227
      %1231 = vset.pattern.permute.xlu0 0
      %1232 = vperm.xlu0 %1231, %v1004
      %v1233 = vpop.permute.xlu0 %1232
      %1236 = vset.pattern.permute.xlu0 0
      %1237 = vperm.xlu0 %1236, %v1005
      %v1238 = vpop.permute.xlu0 %1237
      %1241 = vset.pattern.permute.xlu0 0
      %1242 = vperm.xlu0 %1241, %v1006
      %v1243 = vpop.permute.xlu0 %1242
      %1246 = vset.pattern.permute.xlu0 0
      %1247 = vperm.xlu0 %1246, %v1007
      %v1248 = vpop.permute.xlu0 %1247
      %1251 = vset.pattern.permute.xlu0 0
      %1252 = vperm.xlu0 %1251, %v1008
      %v1253 = vpop.permute.xlu0 %1252
      %1256 = vset.pattern.permute.xlu0 0
      %1257 = vperm.xlu0 %1256, %v1009
      %v1258 = vpop.permute.xlu0 %1257
      %1261 = vset.pattern.permute.xlu0 0
      %1262 = vperm.xlu0 %1261, %v1010
      %v1263 = vpop.permute.xlu0 %1262
      %1266 = vset.pattern.permute.xlu0 0
      %1267 = vperm.xlu0 %1266, %v1011
      %v1268 = vpop.permute.xlu0 %1267
      %1271 = vset.pattern.permute.xlu0 0
      %1272 = vperm.xlu0 %1271, %v1012
      %v1273 = vpop.permute.xlu0 %1272
      %1276 = vset.pattern.permute.xlu0 0
      %1277 = vperm.xlu0 %1276, %v1013
      %v1278 = vpop.permute.xlu0 %1277
      %1281 = vset.pattern.permute.xlu0 0
      %1282 = vperm.xlu0 %1281, %v1014
      %v1283 = vpop.permute.xlu0 %1282
      %v1285 = vmul.f32 %v907, %v1018
      %v1286 = vmul.f32 %v908, %v1023
      %v1287 = vmul.f32 %v909, %v1028
      %v1288 = vmul.f32 %v910, %v1033
      %v1289 = vmul.f32 %v911, %v1038
      %v1290 = vmul.f32 %v912, %v1043
      %v1291 = vmul.f32 %v913, %v1048
      %v1292 = vmul.f32 %v914, %v1053
      %v1293 = vmul.f32 %v915, %v1058
      %v1294 = vmul.f32 %v916, %v1063
      %v1295 = vmul.f32 %v917, %v1068
      %v1296 = vmul.f32 %v918, %v1073
      %v1297 = vmul.f32 %v919, %v1078
      %v1298 = vmul.f32 %v920, %v1083
      %v1299 = vmul.f32 %v921, %v1088
      %v1300 = vmul.f32 %v922, %v1093
      %v1301 = vmul.f32 %v923, %v1098
      %v1302 = vmul.f32 %v924, %v1103
      %v1303 = vmul.f32 %v925, %v1108
      %v1304 = vmul.f32 %v926, %v1113
      %v1305 = vmul.f32 %v927, %v1118
      %v1306 = vmul.f32 %v928, %v1123
      %v1307 = vmul.f32 %v929, %v1128
      %v1308 = vmul.f32 %v930, %v1133
      %v1309 = vmul.f32 %v931, %v1138
      %v1310 = vmul.f32 %v932, %v1143
      %v1311 = vmul.f32 %v933, %v1148
      %v1312 = vmul.f32 %v934, %v1153
      %v1313 = vmul.f32 %v935, %v1158
      %v1314 = vmul.f32 %v936, %v1163
      %v1315 = vmul.f32 %v937, %v1168
      %v1316 = vmul.f32 %v938, %v1173
      %v1317 = vmul.f32 %v939, %v1178
      %v1318 = vmul.f32 %v940, %v1183
      %v1319 = vmul.f32 %v941, %v1188
      %v1320 = vmul.f32 %v942, %v1193
      %v1321 = vmul.f32 %v943, %v1198
      %v1322 = vmul.f32 %v944, %v1203
      %v1323 = vmul.f32 %v945, %v1208
      %v1324 = vmul.f32 %v946, %v1213
      %v1325 = vmul.f32 %v947, %v1218
      %v1326 = vmul.f32 %v948, %v1223
      %v1327 = vmul.f32 %v949, %v1228
      %v1328 = vmul.f32 %v950, %v1233
      %v1329 = vmul.f32 %v951, %v1238
      %v1330 = vmul.f32 %v952, %v1243
      %v1331 = vmul.f32 %v953, %v1248
      %v1332 = vmul.f32 %v954, %v1253
      %v1333 = vmul.f32 %v955, %v1258
      %v1334 = vmul.f32 %v956, %v1263
      %v1335 = vmul.f32 %v957, %v1268
      %v1336 = vmul.f32 %v958, %v1273
      %v1337 = vmul.f32 %v959, %v1278
      %v1338 = vmul.f32 %v960, %v1283
      %v1339 = vpack.c.bf16 %v1286, %v1285
      %v1340 = vpack.c.bf16 %v1288, %v1287
      %v1341 = vpack.c.bf16 %v1290, %v1289
      %v1342 = vpack.c.bf16 %v1292, %v1291
      %v1343 = vpack.c.bf16 %v1294, %v1293
      %v1344 = vpack.c.bf16 %v1296, %v1295
      %v1345 = vpack.c.bf16 %v1298, %v1297
      %v1346 = vpack.c.bf16 %v1300, %v1299
      %v1347 = vpack.c.bf16 %v1302, %v1301
      %v1348 = vpack.c.bf16 %v1304, %v1303
      %v1349 = vpack.c.bf16 %v1306, %v1305
      %v1350 = vpack.c.bf16 %v1308, %v1307
      %v1351 = vpack.c.bf16 %v1310, %v1309
      %v1352 = vpack.c.bf16 %v1312, %v1311
      %v1353 = vpack.c.bf16 %v1314, %v1313
      %v1354 = vpack.c.bf16 %v1316, %v1315
      %v1355 = vpack.c.bf16 %v1318, %v1317
      %v1356 = vpack.c.bf16 %v1320, %v1319
      %v1357 = vpack.c.bf16 %v1322, %v1321
      %v1358 = vpack.c.bf16 %v1324, %v1323
      %v1359 = vpack.c.bf16 %v1326, %v1325
      %v1360 = vpack.c.bf16 %v1328, %v1327
      %v1361 = vpack.c.bf16 %v1330, %v1329
      %v1362 = vpack.c.bf16 %v1332, %v1331
      %v1363 = vpack.c.bf16 %v1334, %v1333
      %v1364 = vpack.c.bf16 %v1336, %v1335
      %v1365 = vpack.c.bf16 %v1338, %v1337
      %v1393 = vunpack.c.l.b16 %v1339
      %v1394 = vunpack.c.h.b16 %v1339
      %v1395 = vunpack.c.l.b16 %v1340
      %v1396 = vunpack.c.h.b16 %v1340
      %v1397 = vunpack.c.l.b16 %v1341
      %v1398 = vunpack.c.h.b16 %v1341
      %v1399 = vunpack.c.l.b16 %v1342
      %v1400 = vunpack.c.h.b16 %v1342
      %v1401 = vunpack.c.l.b16 %v1343
      %v1402 = vunpack.c.h.b16 %v1343
      %v1403 = vunpack.c.l.b16 %v1344
      %v1404 = vunpack.c.h.b16 %v1344
      %v1405 = vunpack.c.l.b16 %v1345
      %v1406 = vunpack.c.h.b16 %v1345
      %v1407 = vunpack.c.l.b16 %v1346
      %v1408 = vunpack.c.h.b16 %v1346
      %v1409 = vunpack.c.l.b16 %v1347
      %v1410 = vunpack.c.h.b16 %v1347
      %v1411 = vunpack.c.l.b16 %v1348
      %v1412 = vunpack.c.h.b16 %v1348
      %v1413 = vunpack.c.l.b16 %v1349
      %v1414 = vunpack.c.h.b16 %v1349
      %v1415 = vunpack.c.l.b16 %v1350
      %v1416 = vunpack.c.h.b16 %v1350
      %v1417 = vunpack.c.l.b16 %v1351
      %v1418 = vunpack.c.h.b16 %v1351
      %v1419 = vunpack.c.l.b16 %v1352
      %v1420 = vunpack.c.h.b16 %v1352
      %v1421 = vunpack.c.l.b16 %v1353
      %v1422 = vunpack.c.h.b16 %v1353
      %v1423 = vunpack.c.l.b16 %v1354
      %v1424 = vunpack.c.h.b16 %v1354
      %v1425 = vunpack.c.l.b16 %v1355
      %v1426 = vunpack.c.h.b16 %v1355
      %v1427 = vunpack.c.l.b16 %v1356
      %v1428 = vunpack.c.h.b16 %v1356
      %v1429 = vunpack.c.l.b16 %v1357
      %v1430 = vunpack.c.h.b16 %v1357
      %v1431 = vunpack.c.l.b16 %v1358
      %v1432 = vunpack.c.h.b16 %v1358
      %v1433 = vunpack.c.l.b16 %v1359
      %v1434 = vunpack.c.h.b16 %v1359
      %v1435 = vunpack.c.l.b16 %v1360
      %v1436 = vunpack.c.h.b16 %v1360
      %v1437 = vunpack.c.l.b16 %v1361
      %v1438 = vunpack.c.h.b16 %v1361
      %v1439 = vunpack.c.l.b16 %v1362
      %v1440 = vunpack.c.h.b16 %v1362
      %v1441 = vunpack.c.l.b16 %v1363
      %v1442 = vunpack.c.h.b16 %v1363
      %v1443 = vunpack.c.l.b16 %v1364
      %v1444 = vunpack.c.h.b16 %v1364
      %v1445 = vunpack.c.l.b16 %v1365
      %v1446 = vunpack.c.h.b16 %v1365
      %v1447 = vpack.c.b16 %v1394, %v1393
      %v1448 = vpack.c.b16 %v1397, %v1396
      %v1449 = vpack.c.b16 %v1400, %v1399
      %v1450 = vpack.c.b16 %v1403, %v1402
      %v1451 = vpack.c.b16 %v1406, %v1405
      %v1452 = vpack.c.b16 %v1409, %v1408
      %v1453 = vpack.c.b16 %v1412, %v1411
      %v1454 = vpack.c.b16 %v1415, %v1414
      %v1455 = vpack.c.b16 %v1418, %v1417
      %v1456 = vpack.c.b16 %v1421, %v1420
      %v1457 = vpack.c.b16 %v1424, %v1423
      %v1458 = vpack.c.b16 %v1427, %v1426
      %v1459 = vpack.c.b16 %v1430, %v1429
      %v1460 = vpack.c.b16 %v1433, %v1432
      %v1461 = vpack.c.b16 %v1436, %v1435
      %v1462 = vpack.c.b16 %v1439, %v1438
      %v1463 = vpack.c.b16 %v1442, %v1441
      %1464 = vrot.lane.b32.xlu0 %v1448, 32
      %v1465 = vpop.permute.xlu0 %1464
      %1466 = vrot.lane.b32.xlu0 %v1449, 32
      %v1467 = vpop.permute.xlu0 %1466
      %1468 = vrot.lane.b32.xlu0 %v1450, 32
      %v1469 = vpop.permute.xlu0 %1468
      %1470 = vrot.lane.b32.xlu0 %v1451, 32
      %v1471 = vpop.permute.xlu0 %1470
      %1472 = vrot.lane.b32.xlu0 %v1452, 32
      %v1473 = vpop.permute.xlu0 %1472
      %1474 = vrot.lane.b32.xlu0 %v1453, 32
      %v1475 = vpop.permute.xlu0 %1474
      %1476 = vrot.lane.b32.xlu0 %v1454, 32
      %v1477 = vpop.permute.xlu0 %1476
      %1478 = vrot.lane.b32.xlu0 %v1455, 32
      %v1479 = vpop.permute.xlu0 %1478
      %1480 = vrot.lane.b32.xlu0 %v1456, 32
      %v1481 = vpop.permute.xlu0 %1480
      %1482 = vrot.lane.b32.xlu0 %v1457, 32
      %v1483 = vpop.permute.xlu0 %1482
      %1484 = vrot.lane.b32.xlu0 %v1458, 32
      %v1485 = vpop.permute.xlu0 %1484
      %1486 = vrot.lane.b32.xlu0 %v1459, 32
      %v1487 = vpop.permute.xlu0 %1486
      %1488 = vrot.lane.b32.xlu0 %v1460, 32
      %v1489 = vpop.permute.xlu0 %1488
      %1490 = vrot.lane.b32.xlu0 %v1461, 32
      %v1491 = vpop.permute.xlu0 %1490
      %1492 = vrot.lane.b32.xlu0 %v1462, 32
      %v1493 = vpop.permute.xlu0 %1492
      %1494 = vrot.lane.b32.xlu0 %v1463, 32
      %v1495 = vpop.permute.xlu0 %1494
      %v1496 = vpack.c.b16 %v1445, %v1444
      %1497 = vrot.lane.b32.xlu0 %v1449, 64
      %v1498 = vpop.permute.xlu0 %1497
      %1499 = vrot.lane.b32.xlu0 %v1450, 64
      %v1500 = vpop.permute.xlu0 %1499
      %1501 = vrot.lane.b32.xlu0 %v1451, 64
      %v1502 = vpop.permute.xlu0 %1501
      %1503 = vrot.lane.b32.xlu0 %v1452, 64
      %v1504 = vpop.permute.xlu0 %1503
      %1505 = vrot.lane.b32.xlu0 %v1453, 64
      %v1506 = vpop.permute.xlu0 %1505
      %1507 = vrot.lane.b32.xlu0 %v1454, 64
      %v1508 = vpop.permute.xlu0 %1507
      %1509 = vrot.lane.b32.xlu0 %v1455, 64
      %v1510 = vpop.permute.xlu0 %1509
      %1511 = vrot.lane.b32.xlu0 %v1456, 64
      %v1512 = vpop.permute.xlu0 %1511
      %1513 = vrot.lane.b32.xlu0 %v1457, 64
      %v1514 = vpop.permute.xlu0 %1513
      %1515 = vrot.lane.b32.xlu0 %v1458, 64
      %v1516 = vpop.permute.xlu0 %1515
      %1517 = vrot.lane.b32.xlu0 %v1459, 64
      %v1518 = vpop.permute.xlu0 %1517
      %1519 = vrot.lane.b32.xlu0 %v1460, 64
      %v1520 = vpop.permute.xlu0 %1519
      %1521 = vrot.lane.b32.xlu0 %v1461, 64
      %v1522 = vpop.permute.xlu0 %1521
      %1523 = vrot.lane.b32.xlu0 %v1462, 64
      %v1524 = vpop.permute.xlu0 %1523
      %1525 = vrot.lane.b32.xlu0 %v1463, 64
      %v1526 = vpop.permute.xlu0 %1525
      %1527 = vrot.lane.b32.xlu0 %v1496, 64
      %v1528 = vpop.permute.xlu0 %1527
      %v1531 = vsel %vm576, %v1447, %v1465
      %v1534 = vsel %vm576, %v1448, %v1467
      %v1537 = vsel %vm576, %v1449, %v1469
      %v1540 = vsel %vm576, %v1450, %v1471
      %v1543 = vsel %vm576, %v1451, %v1473
      %v1546 = vsel %vm576, %v1452, %v1475
      %v1549 = vsel %vm576, %v1453, %v1477
      %v1552 = vsel %vm576, %v1454, %v1479
      %v1555 = vsel %vm576, %v1455, %v1481
      %v1558 = vsel %vm576, %v1456, %v1483
      %v1561 = vsel %vm576, %v1457, %v1485
      %v1564 = vsel %vm576, %v1458, %v1487
      %v1567 = vsel %vm576, %v1459, %v1489
      %v1570 = vsel %vm576, %v1460, %v1491
      %v1573 = vsel %vm576, %v1461, %v1493
      %v1576 = vsel %vm576, %v1462, %v1495
      %vm1577 = vcmask 523264
      %v1579 = vsel %vm1577, %v1531, %v1498
      %v1581 = vsel %vm1577, %v1534, %v1500
      %v1583 = vsel %vm1577, %v1537, %v1502
      %v1585 = vsel %vm1577, %v1540, %v1504
      %v1587 = vsel %vm1577, %v1543, %v1506
      %v1589 = vsel %vm1577, %v1546, %v1508
      %v1591 = vsel %vm1577, %v1549, %v1510
      %v1593 = vsel %vm1577, %v1552, %v1512
      %v1595 = vsel %vm1577, %v1555, %v1514
      %v1597 = vsel %vm1577, %v1558, %v1516
      %v1599 = vsel %vm1577, %v1561, %v1518
      %v1601 = vsel %vm1577, %v1564, %v1520
      %v1603 = vsel %vm1577, %v1567, %v1522
      %v1605 = vsel %vm1577, %v1570, %v1524
      %v1607 = vsel %vm1577, %v1573, %v1526
      %v1609 = vsel %vm1577, %v1576, %v1528
      %v1610 = vld [vmem:[%s4] sm:$0xf]
      %v1611 = vld [vmem:[%s4 + $0x4] sm:$0xf]
      %v1612 = vld [vmem:[%s4 + $0x8] sm:$0xf]
      %v1613 = vld [vmem:[%s4 + $0xc] sm:$0xf]
      %v1614 = vld [vmem:[%s4 + $0x10] sm:$0xf]
      %v1615 = vld [vmem:[%s4 + $0x14] sm:$0xf]
      %v1616 = vld [vmem:[%s4 + $0x18] sm:$0xf]
      %v1617 = vld [vmem:[%s4 + $0x1c] sm:$0xf]
      %v1618 = vld [vmem:[%s4 + $0x20] sm:$0xf]
      %v1619 = vld [vmem:[%s4 + $0x24] sm:$0xf]
      %v1620 = vld [vmem:[%s4 + $0x28] sm:$0xf]
      %v1621 = vld [vmem:[%s4 + $0x2c] sm:$0xf]
      %v1622 = vpack.c.b16 %v1395, %v1395
      %v1623 = vpack.c.b16 %v1398, %v1398
      %v1624 = vpack.c.b16 %v1401, %v1401
      %v1625 = vpack.c.b16 %v1404, %v1404
      %v1626 = vpack.c.b16 %v1407, %v1407
      %v1627 = vpack.c.b16 %v1410, %v1410
      %v1628 = vpack.c.b16 %v1413, %v1413
      %v1629 = vpack.c.b16 %v1416, %v1416
      %v1630 = vpack.c.b16 %v1419, %v1419
      %v1631 = vpack.c.b16 %v1422, %v1422
      %v1632 = vpack.c.b16 %v1425, %v1425
      %v1633 = vpack.c.b16 %v1428, %v1428
      %v1634 = vpack.c.b16 %v1431, %v1431
      %v1635 = vpack.c.b16 %v1434, %v1434
      %v1636 = vpack.c.b16 %v1437, %v1437
      %v1637 = vpack.c.b16 %v1440, %v1440
      %v1638 = vpack.c.b16 %v1443, %v1443
      %1639 = vrot.lane.b32.xlu0 %v1623, 32
      %v1640 = vpop.permute.xlu0 %1639
      %1641 = vrot.lane.b32.xlu0 %v1624, 32
      %v1642 = vpop.permute.xlu0 %1641
      %1643 = vrot.lane.b32.xlu0 %v1625, 32
      %v1644 = vpop.permute.xlu0 %1643
      %1645 = vrot.lane.b32.xlu0 %v1626, 32
      %v1646 = vpop.permute.xlu0 %1645
      %1647 = vrot.lane.b32.xlu0 %v1627, 32
      %v1648 = vpop.permute.xlu0 %1647
      %1649 = vrot.lane.b32.xlu0 %v1628, 32
      %v1650 = vpop.permute.xlu0 %1649
      %1651 = vrot.lane.b32.xlu0 %v1629, 32
      %v1652 = vpop.permute.xlu0 %1651
      %1653 = vrot.lane.b32.xlu0 %v1630, 32
      %v1654 = vpop.permute.xlu0 %1653
      %1655 = vrot.lane.b32.xlu0 %v1631, 32
      %v1656 = vpop.permute.xlu0 %1655
      %1657 = vrot.lane.b32.xlu0 %v1632, 32
      %v1658 = vpop.permute.xlu0 %1657
      %1659 = vrot.lane.b32.xlu0 %v1633, 32
      %v1660 = vpop.permute.xlu0 %1659
      %1661 = vrot.lane.b32.xlu0 %v1634, 32
      %v1662 = vpop.permute.xlu0 %1661
      %1663 = vrot.lane.b32.xlu0 %v1635, 32
      %v1664 = vpop.permute.xlu0 %1663
      %1665 = vrot.lane.b32.xlu0 %v1636, 32
      %v1666 = vpop.permute.xlu0 %1665
      %1667 = vrot.lane.b32.xlu0 %v1637, 32
      %v1668 = vpop.permute.xlu0 %1667
      %1669 = vrot.lane.b32.xlu0 %v1638, 32
      %v1670 = vpop.permute.xlu0 %1669
      %v1671 = vpack.c.b16 %v1446, %v1446
      %1672 = vrot.lane.b32.xlu0 %v1624, 64
      %v1673 = vpop.permute.xlu0 %1672
      %1674 = vrot.lane.b32.xlu0 %v1625, 64
      %v1675 = vpop.permute.xlu0 %1674
      %1676 = vrot.lane.b32.xlu0 %v1626, 64
      %v1677 = vpop.permute.xlu0 %1676
      %1678 = vrot.lane.b32.xlu0 %v1627, 64
      %v1679 = vpop.permute.xlu0 %1678
      %1680 = vrot.lane.b32.xlu0 %v1628, 64
      %v1681 = vpop.permute.xlu0 %1680
      %1682 = vrot.lane.b32.xlu0 %v1629, 64
      %v1683 = vpop.permute.xlu0 %1682
      %1684 = vrot.lane.b32.xlu0 %v1630, 64
      %v1685 = vpop.permute.xlu0 %1684
      %1686 = vrot.lane.b32.xlu0 %v1631, 64
      %v1687 = vpop.permute.xlu0 %1686
      %1688 = vrot.lane.b32.xlu0 %v1632, 64
      %v1689 = vpop.permute.xlu0 %1688
      %1690 = vrot.lane.b32.xlu0 %v1633, 64
      %v1691 = vpop.permute.xlu0 %1690
      %1692 = vrot.lane.b32.xlu0 %v1634, 64
      %v1693 = vpop.permute.xlu0 %1692
      %1694 = vrot.lane.b32.xlu0 %v1635, 64
      %v1695 = vpop.permute.xlu0 %1694
      %1696 = vrot.lane.b32.xlu0 %v1636, 64
      %v1697 = vpop.permute.xlu0 %1696
      %1698 = vrot.lane.b32.xlu0 %v1637, 64
      %v1699 = vpop.permute.xlu0 %1698
      %1700 = vrot.lane.b32.xlu0 %v1638, 64
      %v1701 = vpop.permute.xlu0 %1700
      %1702 = vrot.lane.b32.xlu0 %v1671, 64
      %v1703 = vpop.permute.xlu0 %1702
      %v1706 = vsel %vm576, %v1622, %v1640
      %v1709 = vsel %vm576, %v1623, %v1642
      %v1712 = vsel %vm576, %v1624, %v1644
      %v1715 = vsel %vm576, %v1625, %v1646
      %v1718 = vsel %vm576, %v1626, %v1648
      %v1721 = vsel %vm576, %v1627, %v1650
      %v1724 = vsel %vm576, %v1628, %v1652
      %v1727 = vsel %vm576, %v1629, %v1654
      %v1730 = vsel %vm576, %v1630, %v1656
      %v1733 = vsel %vm576, %v1631, %v1658
      %v1736 = vsel %vm576, %v1632, %v1660
      %v1739 = vsel %vm576, %v1633, %v1662
      %v1742 = vsel %vm576, %v1634, %v1664
      %v1745 = vsel %vm576, %v1635, %v1666
      %v1748 = vsel %vm576, %v1636, %v1668
      %v1751 = vsel %vm576, %v1637, %v1670
      %v1753 = vsel %vm1577, %v1706, %v1673
      %v1755 = vsel %vm1577, %v1709, %v1675
      %v1757 = vsel %vm1577, %v1712, %v1677
      %v1759 = vsel %vm1577, %v1715, %v1679
      %v1761 = vsel %vm1577, %v1718, %v1681
      %v1763 = vsel %vm1577, %v1721, %v1683
      %v1765 = vsel %vm1577, %v1724, %v1685
      %v1767 = vsel %vm1577, %v1727, %v1687
      %v1769 = vsel %vm1577, %v1730, %v1689
      %v1771 = vsel %vm1577, %v1733, %v1691
      %v1773 = vsel %vm1577, %v1736, %v1693
      %v1775 = vsel %vm1577, %v1739, %v1695
      %v1777 = vsel %vm1577, %v1742, %v1697
      %v1779 = vsel %vm1577, %v1745, %v1699
      %v1781 = vsel %vm1577, %v1748, %v1701
      %v1783 = vsel %vm1577, %v1751, %v1703
      %vm1784 = vsmask.f32 7424
      %v1785 = vshrl.u32 %v1579, 16
      %v1787 = vshll.u32 %v1579, 16
      %v1789 = vrot.slane %v1787, 1
      %v1790 = vor.u32 %v1785, %v1789
      %v1791 = vshll.u32 %v1753, 16
      %v1793 = vrot.slane %v1791, 1
      %v1794 = vsel %vm1784, %v1790, %v1793
      %v1795 = vshrl.u32 %v1581, 16
      %v1797 = vshll.u32 %v1581, 16
      %v1799 = vrot.slane %v1797, 1
      %v1800 = vor.u32 %v1795, %v1799
      %v1801 = vshll.u32 %v1755, 16
      %v1803 = vrot.slane %v1801, 1
      %v1804 = vsel %vm1784, %v1800, %v1803
      %v1805 = vshrl.u32 %v1583, 16
      %v1807 = vshll.u32 %v1583, 16
      %v1809 = vrot.slane %v1807, 1
      %v1810 = vor.u32 %v1805, %v1809
      %v1811 = vshll.u32 %v1757, 16
      %v1813 = vrot.slane %v1811, 1
      %v1814 = vsel %vm1784, %v1810, %v1813
      %v1815 = vshrl.u32 %v1585, 16
      %v1817 = vshll.u32 %v1585, 16
      %v1819 = vrot.slane %v1817, 1
      %v1820 = vor.u32 %v1815, %v1819
      %v1821 = vshll.u32 %v1759, 16
      %v1823 = vrot.slane %v1821, 1
      %v1824 = vsel %vm1784, %v1820, %v1823
      %v1825 = vshrl.u32 %v1587, 16
      %v1827 = vshll.u32 %v1587, 16
      %v1829 = vrot.slane %v1827, 1
      %v1830 = vor.u32 %v1825, %v1829
      %v1831 = vshll.u32 %v1761, 16
      %v1833 = vrot.slane %v1831, 1
      %v1834 = vsel %vm1784, %v1830, %v1833
      %v1835 = vshrl.u32 %v1589, 16
      %v1837 = vshll.u32 %v1589, 16
      %v1839 = vrot.slane %v1837, 1
      %v1840 = vor.u32 %v1835, %v1839
      %v1841 = vshll.u32 %v1763, 16
      %v1843 = vrot.slane %v1841, 1
      %v1844 = vsel %vm1784, %v1840, %v1843
      %v1845 = vshrl.u32 %v1591, 16
      %v1847 = vshll.u32 %v1591, 16
      %v1849 = vrot.slane %v1847, 1
      %v1850 = vor.u32 %v1845, %v1849
      %v1851 = vshll.u32 %v1765, 16
      %v1853 = vrot.slane %v1851, 1
      %v1854 = vsel %vm1784, %v1850, %v1853
      %v1855 = vshrl.u32 %v1593, 16
      %v1857 = vshll.u32 %v1593, 16
      %v1859 = vrot.slane %v1857, 1
      %v1860 = vor.u32 %v1855, %v1859
      %v1861 = vshll.u32 %v1767, 16
      %v1863 = vrot.slane %v1861, 1
      %v1864 = vsel %vm1784, %v1860, %v1863
      %v1865 = vshrl.u32 %v1595, 16
      %v1867 = vshll.u32 %v1595, 16
      %v1869 = vrot.slane %v1867, 1
      %v1870 = vor.u32 %v1865, %v1869
      %v1871 = vshll.u32 %v1769, 16
      %v1873 = vrot.slane %v1871, 1
      %v1874 = vsel %vm1784, %v1870, %v1873
      %v1875 = vshrl.u32 %v1597, 16
      %v1877 = vshll.u32 %v1597, 16
      %v1879 = vrot.slane %v1877, 1
      %v1880 = vor.u32 %v1875, %v1879
      %v1881 = vshll.u32 %v1771, 16
      %v1883 = vrot.slane %v1881, 1
      %v1884 = vsel %vm1784, %v1880, %v1883
      %v1885 = vshrl.u32 %v1599, 16
      %v1887 = vshll.u32 %v1599, 16
      %v1889 = vrot.slane %v1887, 1
      %v1890 = vor.u32 %v1885, %v1889
      %v1891 = vshll.u32 %v1773, 16
      %v1893 = vrot.slane %v1891, 1
      %v1894 = vsel %vm1784, %v1890, %v1893
      %v1895 = vshrl.u32 %v1601, 16
      %v1897 = vshll.u32 %v1601, 16
      %v1899 = vrot.slane %v1897, 1
      %v1900 = vor.u32 %v1895, %v1899
      %v1901 = vshll.u32 %v1775, 16
      %v1903 = vrot.slane %v1901, 1
      %v1904 = vsel %vm1784, %v1900, %v1903
      %v1905 = vshrl.u32 %v1603, 16
      %v1907 = vshll.u32 %v1603, 16
      %v1909 = vrot.slane %v1907, 1
      %v1910 = vor.u32 %v1905, %v1909
      %v1911 = vshll.u32 %v1777, 16
      %v1913 = vrot.slane %v1911, 1
      %v1914 = vsel %vm1784, %v1910, %v1913
      %v1915 = vshrl.u32 %v1605, 16
      %v1917 = vshll.u32 %v1605, 16
      %v1919 = vrot.slane %v1917, 1
      %v1920 = vor.u32 %v1915, %v1919
      %v1921 = vshll.u32 %v1779, 16
      %v1923 = vrot.slane %v1921, 1
      %v1924 = vsel %vm1784, %v1920, %v1923
      %v1925 = vshrl.u32 %v1607, 16
      %v1927 = vshll.u32 %v1607, 16
      %v1929 = vrot.slane %v1927, 1
      %v1930 = vor.u32 %v1925, %v1929
      %v1931 = vshll.u32 %v1781, 16
      %v1933 = vrot.slane %v1931, 1
      %v1934 = vsel %vm1784, %v1930, %v1933
      %v1935 = vshrl.u32 %v1609, 16
      %v1937 = vshll.u32 %v1609, 16
      %v1939 = vrot.slane %v1937, 1
      %v1940 = vor.u32 %v1935, %v1939
      %v1941 = vshll.u32 %v1783, 16
      %v1943 = vrot.slane %v1941, 1
      %v1944 = vsel %vm1784, %v1940, %v1943
      %s1945 = scalar_lea.vmem %s4, 48
      %v1946 = vld [vmem:[%s1945] sm:$0xf]
      %v1947 = vld [vmem:[%s1945 + $0x4] sm:$0xf]
      %v1948 = vld [vmem:[%s1945 + $0x8] sm:$0xf]
      %v1949 = vld [vmem:[%s1945 + $0xc] sm:$0xf]
      %v1950 = vld [vmem:[%s1945 + $0x10] sm:$0xf]
      %v1951 = vld [vmem:[%s1945 + $0x14] sm:$0xf]
      %v1952 = vld [vmem:[%s1945 + $0x18] sm:$0xf]
      %v1953 = vld [vmem:[%s1945 + $0x1c] sm:$0xf]
      %v1954 = vld [vmem:[%s1945 + $0x20] sm:$0xf]
      %v1955 = vld [vmem:[%s1945 + $0x24] sm:$0xf]
      %v1956 = vld [vmem:[%s1945 + $0x28] sm:$0xf]
      %v1957 = vld [vmem:[%s1945 + $0x2c] sm:$0xf]
      %v1970 = vunpack.c.l.b16 %v1946
      %v1971 = vunpack.c.l.b16 %v1947
      %v1972 = vunpack.c.l.b16 %v1948
      %v1973 = vunpack.c.l.b16 %v1949
      %v1974 = vunpack.c.l.b16 %v1950
      %v1975 = vunpack.c.l.b16 %v1951
      %v1976 = vunpack.c.l.b16 %v1952
      %v1977 = vunpack.c.l.b16 %v1953
      %v1978 = vunpack.c.l.b16 %v1954
      %v1979 = vunpack.c.l.b16 %v1955
      %v1980 = vunpack.c.l.b16 %v1956
      %v1981 = vunpack.c.l.b16 %v1957
      %v1982 = vpack.c.b16 %v1971, %v1970
      %v1983 = vpack.c.b16 %v1973, %v1972
      %v1984 = vpack.c.b16 %v1975, %v1974
      %v1985 = vpack.c.b16 %v1977, %v1976
      %v1986 = vpack.c.b16 %v1979, %v1978
      %v1987 = vpack.c.b16 %v1981, %v1980
      %vm1994 = vcmask 785408
      %v1996 = vsel %vm1994, %v1794, 0
      %v1999 = vsel %vm1994, %v1804, 0
      %v2002 = vsel %vm1994, %v1814, 0
      %v2005 = vsel %vm1994, %v1824, 0
      %v2008 = vsel %vm1994, %v1834, 0
      %v2011 = vsel %vm1994, %v1844, 0
      %v2014 = vsel %vm1994, %v1854, 0
      %v2017 = vsel %vm1994, %v1864, 0
      %v2020 = vsel %vm1994, %v1874, 0
      %v2023 = vsel %vm1994, %v1884, 0
      %v2026 = vsel %vm1994, %v1894, 0
      %v2029 = vsel %vm1994, %v1904, 0
      %v2032 = vsel %vm1994, %v1914, 0
      %v2035 = vsel %vm1994, %v1924, 0
      %v2038 = vsel %vm1994, %v1934, 0
      %v2041 = vsel %vm1994, %v1944, 0
      %2043 = vmatprep.subr.bf16.mxu0 0
      %2044 = vmatpush1.bf16.msra.mxu0 0
      %2045 = vmatprep.subr.bf16.mxu0 0
      %2046 = vmatpush1.bf16.msra.mxu0 0
      %2047 = vmatprep.subr.bf16.mxu0 0
      %2048 = vmatpush1.bf16.msra.mxu0 %v1987
      %2049 = vmatprep.subr.bf16.mxu0 0
      %2050 = vmatpush1.bf16.msra.mxu0 %v1986
      %2051 = vmatprep.subr.bf16.mxu0 0
      %2052 = vmatpush1.bf16.msra.mxu0 %v1985
      %2053 = vmatprep.subr.bf16.mxu0 0
      %2054 = vmatpush1.bf16.msra.mxu0 %v1984
      %2055 = vmatprep.subr.bf16.mxu0 0
      %2056 = vmatpush1.bf16.msra.mxu0 %v1983
      %2057 = vmatprep.subr.bf16.mxu0 0
      %2058 = vmatpush1.bf16.msra.mxu0 %v1982
      %2059 = vmatprep.subr.bf16.mxu0 0
      %2060 = vmatpush2.bf16.msra.mxu0 0
      %2061 = vmatprep.subr.bf16.mxu0 0
      %2062 = vmatpush2.bf16.msra.mxu0 0
      %2063 = vmatprep.subr.bf16.mxu0 0
      %2064 = vmatpush2.bf16.msra.mxu0 0
      %2065 = vmatprep.subr.bf16.mxu0 0
      %2066 = vmatpush2.bf16.msra.mxu0 0
      %2067 = vmatprep.subr.bf16.mxu0 0
      %2068 = vmatpush2.bf16.msra.mxu0 0
      %2069 = vmatprep.subr.bf16.mxu0 0
      %2070 = vmatpush2.bf16.msra.mxu0 0
      %2071 = vmatprep.subr.bf16.mxu0 0
      %2072 = vmatpush2.bf16.msra.mxu0 0
      %2073 = vmatprep.subr.bf16.mxu0 0
      %2074 = vmatpush2.bf16.msra.mxu0 0
      %2075 = vmatprep.mubr.bf16.mxu0 0
      %2076 = vmatmul.mubr.bf16.gmra.mxu0 %v1996
      %v2077 = vpop.f32.mrf.mxu0
      %v2078 = vadd.f32 0.0, %v2077
      %v2079 = vpop.f32.mrf.mxu0
      %v2080 = vpop.f32.mrf.mxu0
      %v2081 = vadd.f32 0.0, %v2080
      %v2082 = vpop.f32.mrf.mxu0
      %2083 = vmatprep.mubr.bf16.mxu0 0
      %2084 = vmatmul.mubr.bf16.gmra.mxu0 %v1999
      %v2085 = vpop.f32.mrf.mxu0
      %v2086 = vadd.f32 0.0, %v2085
      %v2087 = vpop.f32.mrf.mxu0
      %v2088 = vpop.f32.mrf.mxu0
      %v2089 = vadd.f32 0.0, %v2088
      %v2090 = vpop.f32.mrf.mxu0
      %2091 = vmatprep.mubr.bf16.mxu0 0
      %2092 = vmatmul.mubr.bf16.gmra.mxu0 %v2002
      %v2093 = vpop.f32.mrf.mxu0
      %v2094 = vadd.f32 0.0, %v2093
      %v2095 = vpop.f32.mrf.mxu0
      %v2096 = vpop.f32.mrf.mxu0
      %v2097 = vadd.f32 0.0, %v2096
      %v2098 = vpop.f32.mrf.mxu0
      %2099 = vmatprep.mubr.bf16.mxu0 0
      %2100 = vmatmul.mubr.bf16.gmra.mxu0 %v2005
      %v2101 = vpop.f32.mrf.mxu0
      %v2102 = vadd.f32 0.0, %v2101
      %v2103 = vpop.f32.mrf.mxu0
      %v2104 = vpop.f32.mrf.mxu0
      %v2105 = vadd.f32 0.0, %v2104
      %v2106 = vpop.f32.mrf.mxu0
      %2107 = vmatprep.mubr.bf16.mxu0 0
      %2108 = vmatmul.mubr.bf16.gmra.mxu0 %v2008
      %v2109 = vpop.f32.mrf.mxu0
      %v2110 = vadd.f32 0.0, %v2109
      %v2111 = vpop.f32.mrf.mxu0
      %v2112 = vpop.f32.mrf.mxu0
      %v2113 = vadd.f32 0.0, %v2112
      %v2114 = vpop.f32.mrf.mxu0
      %2115 = vmatprep.mubr.bf16.mxu0 0
      %2116 = vmatmul.mubr.bf16.gmra.mxu0 %v2011
      %v2117 = vpop.f32.mrf.mxu0
      %v2118 = vadd.f32 0.0, %v2117
      %v2119 = vpop.f32.mrf.mxu0
      %v2120 = vpop.f32.mrf.mxu0
      %v2121 = vadd.f32 0.0, %v2120
      %v2122 = vpop.f32.mrf.mxu0
      %2123 = vmatprep.mubr.bf16.mxu0 0
      %2124 = vmatmul.mubr.bf16.gmra.mxu0 %v2014
      %v2125 = vpop.f32.mrf.mxu0
      %v2126 = vadd.f32 0.0, %v2125
      %v2127 = vpop.f32.mrf.mxu0
      %v2128 = vpop.f32.mrf.mxu0
      %v2129 = vadd.f32 0.0, %v2128
      %v2130 = vpop.f32.mrf.mxu0
      %2131 = vmatprep.mubr.bf16.mxu0 0
      %2132 = vmatmul.mubr.bf16.gmra.mxu0 %v2017
      %v2133 = vpop.f32.mrf.mxu0
      %v2134 = vadd.f32 0.0, %v2133
      %v2135 = vpop.f32.mrf.mxu0
      %v2136 = vpop.f32.mrf.mxu0
      %v2137 = vadd.f32 0.0, %v2136
      %v2138 = vpop.f32.mrf.mxu0
      %2139 = vmatprep.mubr.bf16.mxu0 0
      %2140 = vmatmul.mubr.bf16.gmra.mxu0 %v2020
      %v2141 = vpop.f32.mrf.mxu0
      %v2142 = vadd.f32 0.0, %v2141
      %v2143 = vpop.f32.mrf.mxu0
      %v2144 = vpop.f32.mrf.mxu0
      %v2145 = vadd.f32 0.0, %v2144
      %v2146 = vpop.f32.mrf.mxu0
      %2147 = vmatprep.mubr.bf16.mxu0 0
      %2148 = vmatmul.mubr.bf16.gmra.mxu0 %v2023
      %v2149 = vpop.f32.mrf.mxu0
      %v2150 = vadd.f32 0.0, %v2149
      %v2151 = vpop.f32.mrf.mxu0
      %v2152 = vpop.f32.mrf.mxu0
      %v2153 = vadd.f32 0.0, %v2152
      %v2154 = vpop.f32.mrf.mxu0
      %2155 = vmatprep.mubr.bf16.mxu0 0
      %2156 = vmatmul.mubr.bf16.gmra.mxu0 %v2026
      %v2157 = vpop.f32.mrf.mxu0
      %v2158 = vadd.f32 0.0, %v2157
      %v2159 = vpop.f32.mrf.mxu0
      %v2160 = vpop.f32.mrf.mxu0
      %v2161 = vadd.f32 0.0, %v2160
      %v2162 = vpop.f32.mrf.mxu0
      %2163 = vmatprep.mubr.bf16.mxu0 0
      %2164 = vmatmul.mubr.bf16.gmra.mxu0 %v2029
      %v2165 = vpop.f32.mrf.mxu0
      %v2166 = vadd.f32 0.0, %v2165
      %v2167 = vpop.f32.mrf.mxu0
      %v2168 = vpop.f32.mrf.mxu0
      %v2169 = vadd.f32 0.0, %v2168
      %v2170 = vpop.f32.mrf.mxu0
      %2171 = vmatprep.mubr.bf16.mxu0 0
      %2172 = vmatmul.mubr.bf16.gmra.mxu0 %v2032
      %v2173 = vpop.f32.mrf.mxu0
      %v2174 = vadd.f32 0.0, %v2173
      %v2175 = vpop.f32.mrf.mxu0
      %v2176 = vpop.f32.mrf.mxu0
      %v2177 = vadd.f32 0.0, %v2176
      %v2178 = vpop.f32.mrf.mxu0
      %2179 = vmatprep.mubr.bf16.mxu0 0
      %2180 = vmatmul.mubr.bf16.gmra.mxu0 %v2035
      %v2181 = vpop.f32.mrf.mxu0
      %v2182 = vadd.f32 0.0, %v2181
      %v2183 = vpop.f32.mrf.mxu0
      %v2184 = vpop.f32.mrf.mxu0
      %v2185 = vadd.f32 0.0, %v2184
      %v2186 = vpop.f32.mrf.mxu0
      %2187 = vmatprep.mubr.bf16.mxu0 0
      %2188 = vmatmul.mubr.bf16.gmra.mxu0 %v2038
      %v2189 = vpop.f32.mrf.mxu0
      %v2190 = vadd.f32 0.0, %v2189
      %v2191 = vpop.f32.mrf.mxu0
      %v2192 = vpop.f32.mrf.mxu0
      %v2193 = vadd.f32 0.0, %v2192
      %v2194 = vpop.f32.mrf.mxu0
      %2195 = vmatprep.mubr.bf16.mxu0 0
      %2196 = vmatmul.mubr.bf16.gmra.mxu0 %v2041
      %v2197 = vpop.f32.mrf.mxu0
      %v2198 = vadd.f32 0.0, %v2197
      %v2199 = vpop.f32.mrf.mxu0
      %v2200 = vpop.f32.mrf.mxu0
      %v2201 = vadd.f32 0.0, %v2200
      %v2202 = vpop.f32.mrf.mxu0
      %2203 = vdwg.mxu0
      %v2216 = vunpack.c.l.b16 %v1610
      %v2217 = vunpack.c.l.b16 %v1611
      %v2218 = vunpack.c.l.b16 %v1612
      %v2219 = vunpack.c.l.b16 %v1613
      %v2220 = vunpack.c.l.b16 %v1614
      %v2221 = vunpack.c.l.b16 %v1615
      %v2222 = vunpack.c.l.b16 %v1616
      %v2223 = vunpack.c.l.b16 %v1617
      %v2224 = vunpack.c.l.b16 %v1618
      %v2225 = vunpack.c.l.b16 %v1619
      %v2226 = vunpack.c.l.b16 %v1620
      %v2227 = vunpack.c.l.b16 %v1621
      %v2228 = vpack.c.b16 %v2217, %v2216
      %v2229 = vpack.c.b16 %v2219, %v2218
      %v2230 = vpack.c.b16 %v2221, %v2220
      %v2231 = vpack.c.b16 %v2223, %v2222
      %v2232 = vpack.c.b16 %v2225, %v2224
      %v2233 = vpack.c.b16 %v2227, %v2226
      %v2240 = vsel %vm1994, %v1579, 0
      %v2242 = vsel %vm1994, %v1581, 0
      %v2244 = vsel %vm1994, %v1583, 0
      %v2246 = vsel %vm1994, %v1585, 0
      %v2248 = vsel %vm1994, %v1587, 0
      %v2250 = vsel %vm1994, %v1589, 0
      %v2252 = vsel %vm1994, %v1591, 0
      %v2254 = vsel %vm1994, %v1593, 0
      %v2256 = vsel %vm1994, %v1595, 0
      %v2258 = vsel %vm1994, %v1597, 0
      %v2260 = vsel %vm1994, %v1599, 0
      %v2262 = vsel %vm1994, %v1601, 0
      %v2264 = vsel %vm1994, %v1603, 0
      %v2266 = vsel %vm1994, %v1605, 0
      %v2268 = vsel %vm1994, %v1607, 0
      %v2270 = vsel %vm1994, %v1609, 0
      %2272 = vmatprep.subr.bf16.mxu0 0
      %2273 = vmatpush1.bf16.msra.mxu0 0
      %2274 = vmatprep.subr.bf16.mxu0 0
      %2275 = vmatpush1.bf16.msra.mxu0 0
      %2276 = vmatprep.subr.bf16.mxu0 0
      %2277 = vmatpush1.bf16.msra.mxu0 %v2233
      %2278 = vmatprep.subr.bf16.mxu0 0
      %2279 = vmatpush1.bf16.msra.mxu0 %v2232
      %2280 = vmatprep.subr.bf16.mxu0 0
      %2281 = vmatpush1.bf16.msra.mxu0 %v2231
      %2282 = vmatprep.subr.bf16.mxu0 0
      %2283 = vmatpush1.bf16.msra.mxu0 %v2230
      %2284 = vmatprep.subr.bf16.mxu0 0
      %2285 = vmatpush1.bf16.msra.mxu0 %v2229
      %2286 = vmatprep.subr.bf16.mxu0 0
      %2287 = vmatpush1.bf16.msra.mxu0 %v2228
      %2288 = vmatprep.subr.bf16.mxu0 0
      %2289 = vmatpush2.bf16.msra.mxu0 0
      %2290 = vmatprep.subr.bf16.mxu0 0
      %2291 = vmatpush2.bf16.msra.mxu0 0
      %2292 = vmatprep.subr.bf16.mxu0 0
      %2293 = vmatpush2.bf16.msra.mxu0 0
      %2294 = vmatprep.subr.bf16.mxu0 0
      %2295 = vmatpush2.bf16.msra.mxu0 0
      %2296 = vmatprep.subr.bf16.mxu0 0
      %2297 = vmatpush2.bf16.msra.mxu0 0
      %2298 = vmatprep.subr.bf16.mxu0 0
      %2299 = vmatpush2.bf16.msra.mxu0 0
      %2300 = vmatprep.subr.bf16.mxu0 0
      %2301 = vmatpush2.bf16.msra.mxu0 0
      %2302 = vmatprep.subr.bf16.mxu0 0
      %2303 = vmatpush2.bf16.msra.mxu0 0
      %2304 = vmatprep.mubr.bf16.mxu0 0
      %2305 = vmatmul.mubr.bf16.gmra.mxu0 %v2240
      %v2306 = vpop.f32.mrf.mxu0
      %v2307 = vadd.f32 %v2078, %v2306
      %v2308 = vpop.f32.mrf.mxu0
      %v2309 = vpop.f32.mrf.mxu0
      %v2310 = vadd.f32 %v2081, %v2309
      %v2311 = vpop.f32.mrf.mxu0
      %2312 = vmatprep.mubr.bf16.mxu0 0
      %2313 = vmatmul.mubr.bf16.gmra.mxu0 %v2242
      %v2314 = vpop.f32.mrf.mxu0
      %v2315 = vadd.f32 %v2086, %v2314
      %v2316 = vpop.f32.mrf.mxu0
      %v2317 = vpop.f32.mrf.mxu0
      %v2318 = vadd.f32 %v2089, %v2317
      %v2319 = vpop.f32.mrf.mxu0
      %2320 = vmatprep.mubr.bf16.mxu0 0
      %2321 = vmatmul.mubr.bf16.gmra.mxu0 %v2244
      %v2322 = vpop.f32.mrf.mxu0
      %v2323 = vadd.f32 %v2094, %v2322
      %v2324 = vpop.f32.mrf.mxu0
      %v2325 = vpop.f32.mrf.mxu0
      %v2326 = vadd.f32 %v2097, %v2325
      %v2327 = vpop.f32.mrf.mxu0
      %2328 = vmatprep.mubr.bf16.mxu0 0
      %2329 = vmatmul.mubr.bf16.gmra.mxu0 %v2246
      %v2330 = vpop.f32.mrf.mxu0
      %v2331 = vadd.f32 %v2102, %v2330
      %v2332 = vpop.f32.mrf.mxu0
      %v2333 = vpop.f32.mrf.mxu0
      %v2334 = vadd.f32 %v2105, %v2333
      %v2335 = vpop.f32.mrf.mxu0
      %2336 = vmatprep.mubr.bf16.mxu0 0
      %2337 = vmatmul.mubr.bf16.gmra.mxu0 %v2248
      %v2338 = vpop.f32.mrf.mxu0
      %v2339 = vadd.f32 %v2110, %v2338
      %v2340 = vpop.f32.mrf.mxu0
      %v2341 = vpop.f32.mrf.mxu0
      %v2342 = vadd.f32 %v2113, %v2341
      %v2343 = vpop.f32.mrf.mxu0
      %2344 = vmatprep.mubr.bf16.mxu0 0
      %2345 = vmatmul.mubr.bf16.gmra.mxu0 %v2250
      %v2346 = vpop.f32.mrf.mxu0
      %v2347 = vadd.f32 %v2118, %v2346
      %v2348 = vpop.f32.mrf.mxu0
      %v2349 = vpop.f32.mrf.mxu0
      %v2350 = vadd.f32 %v2121, %v2349
      %v2351 = vpop.f32.mrf.mxu0
      %2352 = vmatprep.mubr.bf16.mxu0 0
      %2353 = vmatmul.mubr.bf16.gmra.mxu0 %v2252
      %v2354 = vpop.f32.mrf.mxu0
      %v2355 = vadd.f32 %v2126, %v2354
      %v2356 = vpop.f32.mrf.mxu0
      %v2357 = vpop.f32.mrf.mxu0
      %v2358 = vadd.f32 %v2129, %v2357
      %v2359 = vpop.f32.mrf.mxu0
      %2360 = vmatprep.mubr.bf16.mxu0 0
      %2361 = vmatmul.mubr.bf16.gmra.mxu0 %v2254
      %v2362 = vpop.f32.mrf.mxu0
      %v2363 = vadd.f32 %v2134, %v2362
      %v2364 = vpop.f32.mrf.mxu0
      %v2365 = vpop.f32.mrf.mxu0
      %v2366 = vadd.f32 %v2137, %v2365
      %v2367 = vpop.f32.mrf.mxu0
      %2368 = vmatprep.mubr.bf16.mxu0 0
      %2369 = vmatmul.mubr.bf16.gmra.mxu0 %v2256
      %v2370 = vpop.f32.mrf.mxu0
      %v2371 = vadd.f32 %v2142, %v2370
      %v2372 = vpop.f32.mrf.mxu0
      %v2373 = vpop.f32.mrf.mxu0
      %v2374 = vadd.f32 %v2145, %v2373
      %v2375 = vpop.f32.mrf.mxu0
      %2376 = vmatprep.mubr.bf16.mxu0 0
      %2377 = vmatmul.mubr.bf16.gmra.mxu0 %v2258
      %v2378 = vpop.f32.mrf.mxu0
      %v2379 = vadd.f32 %v2150, %v2378
      %v2380 = vpop.f32.mrf.mxu0
      %v2381 = vpop.f32.mrf.mxu0
      %v2382 = vadd.f32 %v2153, %v2381
      %v2383 = vpop.f32.mrf.mxu0
      %2384 = vmatprep.mubr.bf16.mxu0 0
      %2385 = vmatmul.mubr.bf16.gmra.mxu0 %v2260
      %v2386 = vpop.f32.mrf.mxu0
      %v2387 = vadd.f32 %v2158, %v2386
      %v2388 = vpop.f32.mrf.mxu0
      %v2389 = vpop.f32.mrf.mxu0
      %v2390 = vadd.f32 %v2161, %v2389
      %v2391 = vpop.f32.mrf.mxu0
      %2392 = vmatprep.mubr.bf16.mxu0 0
      %2393 = vmatmul.mubr.bf16.gmra.mxu0 %v2262
      %v2394 = vpop.f32.mrf.mxu0
      %v2395 = vadd.f32 %v2166, %v2394
      %v2396 = vpop.f32.mrf.mxu0
      %v2397 = vpop.f32.mrf.mxu0
      %v2398 = vadd.f32 %v2169, %v2397
      %v2399 = vpop.f32.mrf.mxu0
      %2400 = vmatprep.mubr.bf16.mxu0 0
      %2401 = vmatmul.mubr.bf16.gmra.mxu0 %v2264
      %v2402 = vpop.f32.mrf.mxu0
      %v2403 = vadd.f32 %v2174, %v2402
      %v2404 = vpop.f32.mrf.mxu0
      %v2405 = vpop.f32.mrf.mxu0
      %v2406 = vadd.f32 %v2177, %v2405
      %v2407 = vpop.f32.mrf.mxu0
      %2408 = vmatprep.mubr.bf16.mxu0 0
      %2409 = vmatmul.mubr.bf16.gmra.mxu0 %v2266
      %v2410 = vpop.f32.mrf.mxu0
      %v2411 = vadd.f32 %v2182, %v2410
      %v2412 = vpop.f32.mrf.mxu0
      %v2413 = vpop.f32.mrf.mxu0
      %v2414 = vadd.f32 %v2185, %v2413
      %v2415 = vpop.f32.mrf.mxu0
      %2416 = vmatprep.mubr.bf16.mxu0 0
      %2417 = vmatmul.mubr.bf16.gmra.mxu0 %v2268
      %v2418 = vpop.f32.mrf.mxu0
      %v2419 = vadd.f32 %v2190, %v2418
      %v2420 = vpop.f32.mrf.mxu0
      %v2421 = vpop.f32.mrf.mxu0
      %v2422 = vadd.f32 %v2193, %v2421
      %v2423 = vpop.f32.mrf.mxu0
      %2424 = vmatprep.mubr.bf16.mxu0 0
      %2425 = vmatmul.mubr.bf16.gmra.mxu0 %v2270
      %v2426 = vpop.f32.mrf.mxu0
      %v2427 = vadd.f32 %v2198, %v2426
      %v2428 = vpop.f32.mrf.mxu0
      %v2429 = vpop.f32.mrf.mxu0
      %v2430 = vadd.f32 %v2201, %v2429
      %v2431 = vpop.f32.mrf.mxu0
      %2432 = vdwg.mxu0
      %vm2465 = vcmask 1046528
      %v2466 = vrot.slane %v1579, 1
      %v2467 = vrot.slane %v1753, 1
      %v2468 = vsel %vm2465, %v2466, %v2467
      %v2469 = vrot.slane %v1581, 1
      %v2470 = vrot.slane %v1755, 1
      %v2471 = vsel %vm2465, %v2469, %v2470
      %v2472 = vrot.slane %v1583, 1
      %v2473 = vrot.slane %v1757, 1
      %v2474 = vsel %vm2465, %v2472, %v2473
      %v2475 = vrot.slane %v1585, 1
      %v2476 = vrot.slane %v1759, 1
      %v2477 = vsel %vm2465, %v2475, %v2476
      %v2478 = vrot.slane %v1587, 1
      %v2479 = vrot.slane %v1761, 1
      %v2480 = vsel %vm2465, %v2478, %v2479
      %v2481 = vrot.slane %v1589, 1
      %v2482 = vrot.slane %v1763, 1
      %v2483 = vsel %vm2465, %v2481, %v2482
      %v2484 = vrot.slane %v1591, 1
      %v2485 = vrot.slane %v1765, 1
      %v2486 = vsel %vm2465, %v2484, %v2485
      %v2487 = vrot.slane %v1593, 1
      %v2488 = vrot.slane %v1767, 1
      %v2489 = vsel %vm2465, %v2487, %v2488
      %v2490 = vrot.slane %v1595, 1
      %v2491 = vrot.slane %v1769, 1
      %v2492 = vsel %vm2465, %v2490, %v2491
      %v2493 = vrot.slane %v1597, 1
      %v2494 = vrot.slane %v1771, 1
      %v2495 = vsel %vm2465, %v2493, %v2494
      %v2496 = vrot.slane %v1599, 1
      %v2497 = vrot.slane %v1773, 1
      %v2498 = vsel %vm2465, %v2496, %v2497
      %v2499 = vrot.slane %v1601, 1
      %v2500 = vrot.slane %v1775, 1
      %v2501 = vsel %vm2465, %v2499, %v2500
      %v2502 = vrot.slane %v1603, 1
      %v2503 = vrot.slane %v1777, 1
      %v2504 = vsel %vm2465, %v2502, %v2503
      %v2505 = vrot.slane %v1605, 1
      %v2506 = vrot.slane %v1779, 1
      %v2507 = vsel %vm2465, %v2505, %v2506
      %v2508 = vrot.slane %v1607, 1
      %v2509 = vrot.slane %v1781, 1
      %v2510 = vsel %vm2465, %v2508, %v2509
      %v2511 = vrot.slane %v1609, 1
      %v2512 = vrot.slane %v1783, 1
      %v2513 = vsel %vm2465, %v2511, %v2512
      %s2514 = scalar_lea.vmem %s4, 96
      %v2515 = vld [vmem:[%s2514] sm:$0xf]
      %v2516 = vld [vmem:[%s2514 + $0x4] sm:$0xf]
      %v2517 = vld [vmem:[%s2514 + $0x8] sm:$0xf]
      %v2518 = vld [vmem:[%s2514 + $0xc] sm:$0xf]
      %v2519 = vld [vmem:[%s2514 + $0x10] sm:$0xf]
      %v2520 = vld [vmem:[%s2514 + $0x14] sm:$0xf]
      %v2521 = vld [vmem:[%s2514 + $0x18] sm:$0xf]
      %v2522 = vld [vmem:[%s2514 + $0x1c] sm:$0xf]
      %v2523 = vld [vmem:[%s2514 + $0x20] sm:$0xf]
      %v2524 = vld [vmem:[%s2514 + $0x24] sm:$0xf]
      %v2525 = vld [vmem:[%s2514 + $0x28] sm:$0xf]
      %v2526 = vld [vmem:[%s2514 + $0x2c] sm:$0xf]
      %v2539 = vunpack.c.l.b16 %v2515
      %v2540 = vunpack.c.l.b16 %v2516
      %v2541 = vunpack.c.l.b16 %v2517
      %v2542 = vunpack.c.l.b16 %v2518
      %v2543 = vunpack.c.l.b16 %v2519
      %v2544 = vunpack.c.l.b16 %v2520
      %v2545 = vunpack.c.l.b16 %v2521
      %v2546 = vunpack.c.l.b16 %v2522
      %v2547 = vunpack.c.l.b16 %v2523
      %v2548 = vunpack.c.l.b16 %v2524
      %v2549 = vunpack.c.l.b16 %v2525
      %v2550 = vunpack.c.l.b16 %v2526
      %v2551 = vpack.c.b16 %v2540, %v2539
      %v2552 = vpack.c.b16 %v2542, %v2541
      %v2553 = vpack.c.b16 %v2544, %v2543
      %v2554 = vpack.c.b16 %v2546, %v2545
      %v2555 = vpack.c.b16 %v2548, %v2547
      %v2556 = vpack.c.b16 %v2550, %v2549
      %v2564 = vsel %vm1994, %v2468, 0
      %v2567 = vsel %vm1994, %v2471, 0
      %v2570 = vsel %vm1994, %v2474, 0
      %v2573 = vsel %vm1994, %v2477, 0
      %v2576 = vsel %vm1994, %v2480, 0
      %v2579 = vsel %vm1994, %v2483, 0
      %v2582 = vsel %vm1994, %v2486, 0
      %v2585 = vsel %vm1994, %v2489, 0
      %v2588 = vsel %vm1994, %v2492, 0
      %v2591 = vsel %vm1994, %v2495, 0
      %v2594 = vsel %vm1994, %v2498, 0
      %v2597 = vsel %vm1994, %v2501, 0
      %v2600 = vsel %vm1994, %v2504, 0
      %v2603 = vsel %vm1994, %v2507, 0
      %v2606 = vsel %vm1994, %v2510, 0
      %v2609 = vsel %vm1994, %v2513, 0
      %2611 = vmatprep.subr.bf16.mxu0 0
      %2612 = vmatpush1.bf16.msra.mxu0 0
      %2613 = vmatprep.subr.bf16.mxu0 0
      %2614 = vmatpush1.bf16.msra.mxu0 0
      %2615 = vmatprep.subr.bf16.mxu0 0
      %2616 = vmatpush1.bf16.msra.mxu0 %v2556
      %2617 = vmatprep.subr.bf16.mxu0 0
      %2618 = vmatpush1.bf16.msra.mxu0 %v2555
      %2619 = vmatprep.subr.bf16.mxu0 0
      %2620 = vmatpush1.bf16.msra.mxu0 %v2554
      %2621 = vmatprep.subr.bf16.mxu0 0
      %2622 = vmatpush1.bf16.msra.mxu0 %v2553
      %2623 = vmatprep.subr.bf16.mxu0 0
      %2624 = vmatpush1.bf16.msra.mxu0 %v2552
      %2625 = vmatprep.subr.bf16.mxu0 0
      %2626 = vmatpush1.bf16.msra.mxu0 %v2551
      %2627 = vmatprep.subr.bf16.mxu0 0
      %2628 = vmatpush2.bf16.msra.mxu0 0
      %2629 = vmatprep.subr.bf16.mxu0 0
      %2630 = vmatpush2.bf16.msra.mxu0 0
      %2631 = vmatprep.subr.bf16.mxu0 0
      %2632 = vmatpush2.bf16.msra.mxu0 0
      %2633 = vmatprep.subr.bf16.mxu0 0
      %2634 = vmatpush2.bf16.msra.mxu0 0
      %2635 = vmatprep.subr.bf16.mxu0 0
      %2636 = vmatpush2.bf16.msra.mxu0 0
      %2637 = vmatprep.subr.bf16.mxu0 0
      %2638 = vmatpush2.bf16.msra.mxu0 0
      %2639 = vmatprep.subr.bf16.mxu0 0
      %2640 = vmatpush2.bf16.msra.mxu0 0
      %2641 = vmatprep.subr.bf16.mxu0 0
      %2642 = vmatpush2.bf16.msra.mxu0 0
      %2643 = vmatprep.mubr.bf16.mxu0 0
      %2644 = vmatmul.mubr.bf16.gmra.mxu0 %v2564
      %v2645 = vpop.f32.mrf.mxu0
      %v2646 = vadd.f32 0.0, %v2645
      %v2647 = vpop.f32.mrf.mxu0
      %v2648 = vpop.f32.mrf.mxu0
      %v2649 = vadd.f32 0.0, %v2648
      %v2650 = vpop.f32.mrf.mxu0
      %2651 = vmatprep.mubr.bf16.mxu0 0
      %2652 = vmatmul.mubr.bf16.gmra.mxu0 %v2567
      %v2653 = vpop.f32.mrf.mxu0
      %v2654 = vadd.f32 0.0, %v2653
      %v2655 = vpop.f32.mrf.mxu0
      %v2656 = vpop.f32.mrf.mxu0
      %v2657 = vadd.f32 0.0, %v2656
      %v2658 = vpop.f32.mrf.mxu0
      %2659 = vmatprep.mubr.bf16.mxu0 0
      %2660 = vmatmul.mubr.bf16.gmra.mxu0 %v2570
      %v2661 = vpop.f32.mrf.mxu0
      %v2662 = vadd.f32 0.0, %v2661
      %v2663 = vpop.f32.mrf.mxu0
      %v2664 = vpop.f32.mrf.mxu0
      %v2665 = vadd.f32 0.0, %v2664
      %v2666 = vpop.f32.mrf.mxu0
      %2667 = vmatprep.mubr.bf16.mxu0 0
      %2668 = vmatmul.mubr.bf16.gmra.mxu0 %v2573
      %v2669 = vpop.f32.mrf.mxu0
      %v2670 = vadd.f32 0.0, %v2669
      %v2671 = vpop.f32.mrf.mxu0
      %v2672 = vpop.f32.mrf.mxu0
      %v2673 = vadd.f32 0.0, %v2672
      %v2674 = vpop.f32.mrf.mxu0
      %2675 = vmatprep.mubr.bf16.mxu0 0
      %2676 = vmatmul.mubr.bf16.gmra.mxu0 %v2576
      %v2677 = vpop.f32.mrf.mxu0
      %v2678 = vadd.f32 0.0, %v2677
      %v2679 = vpop.f32.mrf.mxu0
      %v2680 = vpop.f32.mrf.mxu0
      %v2681 = vadd.f32 0.0, %v2680
      %v2682 = vpop.f32.mrf.mxu0
      %2683 = vmatprep.mubr.bf16.mxu0 0
      %2684 = vmatmul.mubr.bf16.gmra.mxu0 %v2579
      %v2685 = vpop.f32.mrf.mxu0
      %v2686 = vadd.f32 0.0, %v2685
      %v2687 = vpop.f32.mrf.mxu0
      %v2688 = vpop.f32.mrf.mxu0
      %v2689 = vadd.f32 0.0, %v2688
      %v2690 = vpop.f32.mrf.mxu0
      %2691 = vmatprep.mubr.bf16.mxu0 0
      %2692 = vmatmul.mubr.bf16.gmra.mxu0 %v2582
      %v2693 = vpop.f32.mrf.mxu0
      %v2694 = vadd.f32 0.0, %v2693
      %v2695 = vpop.f32.mrf.mxu0
      %v2696 = vpop.f32.mrf.mxu0
      %v2697 = vadd.f32 0.0, %v2696
      %v2698 = vpop.f32.mrf.mxu0
      %2699 = vmatprep.mubr.bf16.mxu0 0
      %2700 = vmatmul.mubr.bf16.gmra.mxu0 %v2585
      %v2701 = vpop.f32.mrf.mxu0
      %v2702 = vadd.f32 0.0, %v2701
      %v2703 = vpop.f32.mrf.mxu0
      %v2704 = vpop.f32.mrf.mxu0
      %v2705 = vadd.f32 0.0, %v2704
      %v2706 = vpop.f32.mrf.mxu0
      %2707 = vmatprep.mubr.bf16.mxu0 0
      %2708 = vmatmul.mubr.bf16.gmra.mxu0 %v2588
      %v2709 = vpop.f32.mrf.mxu0
      %v2710 = vadd.f32 0.0, %v2709
      %v2711 = vpop.f32.mrf.mxu0
      %v2712 = vpop.f32.mrf.mxu0
      %v2713 = vadd.f32 0.0, %v2712
      %v2714 = vpop.f32.mrf.mxu0
      %2715 = vmatprep.mubr.bf16.mxu0 0
      %2716 = vmatmul.mubr.bf16.gmra.mxu0 %v2591
      %v2717 = vpop.f32.mrf.mxu0
      %v2718 = vadd.f32 0.0, %v2717
      %v2719 = vpop.f32.mrf.mxu0
      %v2720 = vpop.f32.mrf.mxu0
      %v2721 = vadd.f32 0.0, %v2720
      %v2722 = vpop.f32.mrf.mxu0
      %2723 = vmatprep.mubr.bf16.mxu0 0
      %2724 = vmatmul.mubr.bf16.gmra.mxu0 %v2594
      %v2725 = vpop.f32.mrf.mxu0
      %v2726 = vadd.f32 0.0, %v2725
      %v2727 = vpop.f32.mrf.mxu0
      %v2728 = vpop.f32.mrf.mxu0
      %v2729 = vadd.f32 0.0, %v2728
      %v2730 = vpop.f32.mrf.mxu0
      %2731 = vmatprep.mubr.bf16.mxu0 0
      %2732 = vmatmul.mubr.bf16.gmra.mxu0 %v2597
      %v2733 = vpop.f32.mrf.mxu0
      %v2734 = vadd.f32 0.0, %v2733
      %v2735 = vpop.f32.mrf.mxu0
      %v2736 = vpop.f32.mrf.mxu0
      %v2737 = vadd.f32 0.0, %v2736
      %v2738 = vpop.f32.mrf.mxu0
      %2739 = vmatprep.mubr.bf16.mxu0 0
      %2740 = vmatmul.mubr.bf16.gmra.mxu0 %v2600
      %v2741 = vpop.f32.mrf.mxu0
      %v2742 = vadd.f32 0.0, %v2741
      %v2743 = vpop.f32.mrf.mxu0
      %v2744 = vpop.f32.mrf.mxu0
      %v2745 = vadd.f32 0.0, %v2744
      %v2746 = vpop.f32.mrf.mxu0
      %2747 = vmatprep.mubr.bf16.mxu0 0
      %2748 = vmatmul.mubr.bf16.gmra.mxu0 %v2603
      %v2749 = vpop.f32.mrf.mxu0
      %v2750 = vadd.f32 0.0, %v2749
      %v2751 = vpop.f32.mrf.mxu0
      %v2752 = vpop.f32.mrf.mxu0
      %v2753 = vadd.f32 0.0, %v2752
      %v2754 = vpop.f32.mrf.mxu0
      %2755 = vmatprep.mubr.bf16.mxu0 0
      %2756 = vmatmul.mubr.bf16.gmra.mxu0 %v2606
      %v2757 = vpop.f32.mrf.mxu0
      %v2758 = vadd.f32 0.0, %v2757
      %v2759 = vpop.f32.mrf.mxu0
      %v2760 = vpop.f32.mrf.mxu0
      %v2761 = vadd.f32 0.0, %v2760
      %v2762 = vpop.f32.mrf.mxu0
      %2763 = vmatprep.mubr.bf16.mxu0 0
      %2764 = vmatmul.mubr.bf16.gmra.mxu0 %v2609
      %v2765 = vpop.f32.mrf.mxu0
      %v2766 = vadd.f32 0.0, %v2765
      %v2767 = vpop.f32.mrf.mxu0
      %v2768 = vpop.f32.mrf.mxu0
      %v2769 = vadd.f32 0.0, %v2768
      %v2770 = vpop.f32.mrf.mxu0
      %2771 = vdwg.mxu0
      %v2772 = vadd.f32 %v2307, %v2646
      %v2773 = vadd.f32 %v2310, %v2649
      %v2774 = vadd.f32 %v2315, %v2654
      %v2775 = vadd.f32 %v2318, %v2657
      %v2776 = vadd.f32 %v2323, %v2662
      %v2777 = vadd.f32 %v2326, %v2665
      %v2778 = vadd.f32 %v2331, %v2670
      %v2779 = vadd.f32 %v2334, %v2673
      %v2780 = vadd.f32 %v2339, %v2678
      %v2781 = vadd.f32 %v2342, %v2681
      %v2782 = vadd.f32 %v2347, %v2686
      %v2783 = vadd.f32 %v2350, %v2689
      %v2784 = vadd.f32 %v2355, %v2694
      %v2785 = vadd.f32 %v2358, %v2697
      %v2786 = vadd.f32 %v2363, %v2702
      %v2787 = vadd.f32 %v2366, %v2705
      %v2788 = vadd.f32 %v2371, %v2710
      %v2789 = vadd.f32 %v2374, %v2713
      %v2790 = vadd.f32 %v2379, %v2718
      %v2791 = vadd.f32 %v2382, %v2721
      %v2792 = vadd.f32 %v2387, %v2726
      %v2793 = vadd.f32 %v2390, %v2729
      %v2794 = vadd.f32 %v2395, %v2734
      %v2795 = vadd.f32 %v2398, %v2737
      %v2796 = vadd.f32 %v2403, %v2742
      %v2797 = vadd.f32 %v2406, %v2745
      %v2798 = vadd.f32 %v2411, %v2750
      %v2799 = vadd.f32 %v2414, %v2753
      %v2800 = vadd.f32 %v2419, %v2758
      %v2801 = vadd.f32 %v2422, %v2761
      %v2802 = vadd.f32 %v2427, %v2766
      %v2803 = vadd.f32 %v2430, %v2769
      %v2804 = vld [vmem:[%s5] sm:$0x1]
      %v2806 = vlaneseq
      %v2807 = vshrl.u32 %v2806, 7
      %v2808 = vsub.s32 0, %v2807
      %v2809 = vrot.slane %v2804, %v2808
      %v2811 = vadd.f32 %v2772, %v2809
      %v2812 = vadd.f32 %v2773, %v2809
      %v2813 = vadd.f32 %v2774, %v2809
      %v2814 = vadd.f32 %v2775, %v2809
      %v2815 = vadd.f32 %v2776, %v2809
      %v2816 = vadd.f32 %v2777, %v2809
      %v2817 = vadd.f32 %v2778, %v2809
      %v2818 = vadd.f32 %v2779, %v2809
      %v2819 = vadd.f32 %v2780, %v2809
      %v2820 = vadd.f32 %v2781, %v2809
      %v2821 = vadd.f32 %v2782, %v2809
      %v2822 = vadd.f32 %v2783, %v2809
      %v2823 = vadd.f32 %v2784, %v2809
      %v2824 = vadd.f32 %v2785, %v2809
      %v2825 = vadd.f32 %v2786, %v2809
      %v2826 = vadd.f32 %v2787, %v2809
      %v2827 = vadd.f32 %v2788, %v2809
      %v2828 = vadd.f32 %v2789, %v2809
      %v2829 = vadd.f32 %v2790, %v2809
      %v2830 = vadd.f32 %v2791, %v2809
      %v2831 = vadd.f32 %v2792, %v2809
      %v2832 = vadd.f32 %v2793, %v2809
      %v2833 = vadd.f32 %v2794, %v2809
      %v2834 = vadd.f32 %v2795, %v2809
      %v2835 = vadd.f32 %v2796, %v2809
      %v2836 = vadd.f32 %v2797, %v2809
      %v2837 = vadd.f32 %v2798, %v2809
      %v2838 = vadd.f32 %v2799, %v2809
      %v2839 = vadd.f32 %v2800, %v2809
      %v2840 = vadd.f32 %v2801, %v2809
      %v2841 = vadd.f32 %v2802, %v2809
      %v2842 = vadd.f32 %v2803, %v2809
      %v2843 = vmax.f32 %v2811, 0.0
      %v2844 = vmax.f32 %v2812, 0.0
      %v2845 = vmax.f32 %v2813, 0.0
      %v2846 = vmax.f32 %v2814, 0.0
      %v2847 = vmax.f32 %v2815, 0.0
      %v2848 = vmax.f32 %v2816, 0.0
      %v2849 = vmax.f32 %v2817, 0.0
      %v2850 = vmax.f32 %v2818, 0.0
      %v2851 = vmax.f32 %v2819, 0.0
      %v2852 = vmax.f32 %v2820, 0.0
      %v2853 = vmax.f32 %v2821, 0.0
      %v2854 = vmax.f32 %v2822, 0.0
      %v2855 = vmax.f32 %v2823, 0.0
      %v2856 = vmax.f32 %v2824, 0.0
      %v2857 = vmax.f32 %v2825, 0.0
      %v2858 = vmax.f32 %v2826, 0.0
      %v2859 = vmax.f32 %v2827, 0.0
      %v2860 = vmax.f32 %v2828, 0.0
      %v2861 = vmax.f32 %v2829, 0.0
      %v2862 = vmax.f32 %v2830, 0.0
      %v2863 = vmax.f32 %v2831, 0.0
      %v2864 = vmax.f32 %v2832, 0.0
      %v2865 = vmax.f32 %v2833, 0.0
      %v2866 = vmax.f32 %v2834, 0.0
      %v2867 = vmax.f32 %v2835, 0.0
      %v2868 = vmax.f32 %v2836, 0.0
      %v2869 = vmax.f32 %v2837, 0.0
      %v2870 = vmax.f32 %v2838, 0.0
      %v2871 = vmax.f32 %v2839, 0.0
      %v2872 = vmax.f32 %v2840, 0.0
      %v2873 = vmax.f32 %v2841, 0.0
      %v2874 = vmax.f32 %v2842, 0.0
      %v2875 = vld [vmem:[%s6] sm:$0xff]
      %v2876 = vld [vmem:[%s7] sm:$0xff]
      %2878 = vset.pattern.permute.xlu0 0
      %2879 = vperm.xlu0 %2878, %v2876
      %v2880 = vpop.permute.xlu0 %2879
      %v2883 = vsel %vm576, %v2875, 0
      %v2886 = vsel %vm576, %v2843, 0
      %v2889 = vsel %vm576, %v2844, 0
      %v2892 = vsel %vm576, %v2845, 0
      %v2895 = vsel %vm576, %v2846, 0
      %v2898 = vsel %vm576, %v2847, 0
      %v2901 = vsel %vm576, %v2848, 0
      %v2904 = vsel %vm576, %v2849, 0
      %v2907 = vsel %vm576, %v2850, 0
      %v2910 = vsel %vm576, %v2851, 0
      %v2913 = vsel %vm576, %v2852, 0
      %v2916 = vsel %vm576, %v2853, 0
      %v2919 = vsel %vm576, %v2854, 0
      %v2922 = vsel %vm576, %v2855, 0
      %v2925 = vsel %vm576, %v2856, 0
      %v2928 = vsel %vm576, %v2857, 0
      %v2931 = vsel %vm576, %v2858, 0
      %v2934 = vsel %vm576, %v2859, 0
      %v2937 = vsel %vm576, %v2860, 0
      %v2940 = vsel %vm576, %v2861, 0
      %v2943 = vsel %vm576, %v2862, 0
      %v2946 = vsel %vm576, %v2863, 0
      %v2949 = vsel %vm576, %v2864, 0
      %v2952 = vsel %vm576, %v2865, 0
      %v2955 = vsel %vm576, %v2866, 0
      %v2958 = vsel %vm576, %v2867, 0
      %v2961 = vsel %vm576, %v2868, 0
      %v2964 = vsel %vm576, %v2869, 0
      %v2967 = vsel %vm576, %v2870, 0
      %v2970 = vsel %vm576, %v2871, 0
      %v2973 = vsel %vm576, %v2872, 0
      %v2976 = vsel %vm576, %v2873, 0
      %v2979 = vsel %vm576, %v2874, 0
      %2981 = vmatprep.subr.mxu0 0.0
      %2982 = vmatpush1.xpose.msra.mxu0 %v2931
      %2983 = vmatprep.subr.mxu0 0.0
      %2984 = vmatpush1.xpose.msra.mxu0 %v2928
      %2985 = vmatprep.subr.mxu0 0.0
      %2986 = vmatpush1.xpose.msra.mxu0 %v2925
      %2987 = vmatprep.subr.mxu0 0.0
      %2988 = vmatpush1.xpose.msra.mxu0 %v2922
      %2989 = vmatprep.subr.mxu0 0.0
      %2990 = vmatpush1.xpose.msra.mxu0 %v2919
      %2991 = vmatprep.subr.mxu0 0.0
      %2992 = vmatpush1.xpose.msra.mxu0 %v2916
      %2993 = vmatprep.subr.mxu0 0.0
      %2994 = vmatpush1.xpose.msra.mxu0 %v2913
      %2995 = vmatprep.subr.mxu0 0.0
      %2996 = vmatpush1.xpose.msra.mxu0 %v2910
      %2997 = vmatprep.subr.mxu0 0.0
      %2998 = vmatpush1.xpose.msra.mxu0 %v2907
      %2999 = vmatprep.subr.mxu0 0.0
      %3000 = vmatpush1.xpose.msra.mxu0 %v2904
      %3001 = vmatprep.subr.mxu0 0.0
      %3002 = vmatpush1.xpose.msra.mxu0 %v2901
      %3003 = vmatprep.subr.mxu0 0.0
      %3004 = vmatpush1.xpose.msra.mxu0 %v2898
      %3005 = vmatprep.subr.mxu0 0.0
      %3006 = vmatpush1.xpose.msra.mxu0 %v2895
      %3007 = vmatprep.subr.mxu0 0.0
      %3008 = vmatpush1.xpose.msra.mxu0 %v2892
      %3009 = vmatprep.subr.mxu0 0.0
      %3010 = vmatpush1.xpose.msra.mxu0 %v2889
      %3011 = vmatprep.subr.mxu0 0.0
      %3012 = vmatpush1.xpose.msra.mxu0 %v2886
      %3013 = vmatprep.subr.mxu0 0.0
      %3014 = vmatpush2.xpose.msra.mxu0 %v2979
      %3015 = vmatprep.subr.mxu0 0.0
      %3016 = vmatpush2.xpose.msra.mxu0 %v2976
      %3017 = vmatprep.subr.mxu0 0.0
      %3018 = vmatpush2.xpose.msra.mxu0 %v2973
      %3019 = vmatprep.subr.mxu0 0.0
      %3020 = vmatpush2.xpose.msra.mxu0 %v2970
      %3021 = vmatprep.subr.mxu0 0.0
      %3022 = vmatpush2.xpose.msra.mxu0 %v2967
      %3023 = vmatprep.subr.mxu0 0.0
      %3024 = vmatpush2.xpose.msra.mxu0 %v2964
      %3025 = vmatprep.subr.mxu0 0.0
      %3026 = vmatpush2.xpose.msra.mxu0 %v2961
      %3027 = vmatprep.subr.mxu0 0.0
      %3028 = vmatpush2.xpose.msra.mxu0 %v2958
      %3029 = vmatprep.subr.mxu0 0.0
      %3030 = vmatpush2.xpose.msra.mxu0 %v2955
      %3031 = vmatprep.subr.mxu0 0.0
      %3032 = vmatpush2.xpose.msra.mxu0 %v2952
      %3033 = vmatprep.subr.mxu0 0.0
      %3034 = vmatpush2.xpose.msra.mxu0 %v2949
      %3035 = vmatprep.subr.mxu0 0.0
      %3036 = vmatpush2.xpose.msra.mxu0 %v2946
      %3037 = vmatprep.subr.mxu0 0.0
      %3038 = vmatpush2.xpose.msra.mxu0 %v2943
      %3039 = vmatprep.subr.mxu0 0.0
      %3040 = vmatpush2.xpose.msra.mxu0 %v2940
      %3041 = vmatprep.subr.mxu0 0.0
      %3042 = vmatpush2.xpose.msra.mxu0 %v2937
      %3043 = vmatprep.subr.mxu0 0.0
      %3044 = vmatpush2.xpose.msra.mxu0 %v2934
      %3045 = vmatprep.mubr.f32.mxu0 0.0
      %3046 = vmatmul.mubr.f32.gmra.mxu0 %v2883
      %v3047 = vpop.f32.mrf.mxu0
      %v3048 = vadd.f32 %v2880, %v3047
      %v3049 = vpop.f32.mrf.mxu0
      %v3050 = vadd.f32 %v2880, %v3049
      %3051 = vdwg.mxu0
      %3052 = vst [vmem:[%s361] sm:$0xff] %v3048
      %3053 = vst [vmem:[%s361 + $0x8] sm:$0xff] %v3050
      %s3054 = smul.u32 2, %s24
      %p3055 = scmp.lt.s32.totalorder %s23, 1
      %s3056 = scalar_select %p3055, %s23, 1
      %p3057 = scmp.lt.s32.totalorder %s3054, 1
      %s3058 = scalar_select %p3057, %s3054, 1
      %s3059 = smul.addr %s3056, 2
      %s3060 = sadd.s32 %s3058, %s3059
      %s3061 = smul.addr %s3060, 8
      %s3062 = scalar_lea.vmem %s8, %s3061
      // Predicated region
      $region53: #{depth_seeding_network.1} parent=51 // pred_check
        %p3063 = pneg %p231
      $region54: #{depth_seeding_network.1} parent=51 // pred_check_branch
        %3065 = sbr.rel (%p3063) target = $region56
      $region55: #{depth_seeding_network.1} parent=51 // pred_region
        %s3066 = smul.u32 2, %s24
      $region56: #{depth_seeding_network.1} parent=51 // pred_fallthru
        _
    $region52: #{depth_seeding_network.1} parent=5 // pred_fallthru
      _
    %p3067 = scmp.le.s32.totalorder 2, %s14
    // Predicated region
    $region57: #{depth_seeding_network.1} parent=5 // pred_check
      %p3068 = pneg %p3067
    $region58: #{depth_seeding_network.1} parent=5 // pred_check_branch
      %3070 = sbr.rel (%p3068) target = $region60
    $region59: #{depth_seeding_network.1} parent=5 // pred_region
      %s3071 = ssub.s32 %s14, 2
      // Predicated region
      $region61: #{depth_seeding_network.1} parent=59 // pred_check
        %p3072 = pneg %p237
      $region62: #{depth_seeding_network.1} parent=59 // pred_check_branch
        %3074 = sbr.rel (%p3072) target = $region64
      $region63: #{depth_seeding_network.1} parent=59 // pred_region
        %s3075 = smul.u32 2, %s26
        %p3076 = scmp.lt.s32.totalorder %s25, 1
        %s3077 = scalar_select %p3076, %s25, 1
        %p3078 = scmp.lt.s32.totalorder %s3075, 1
        %s3079 = scalar_select %p3078, %s3075, 1
        %s3080 = smul.addr %s3077, 2
        %s3081 = sadd.s32 %s3079, %s3080
        %s3082 = smul.addr %s3081, 8
        %s3083 = scalar_lea.vmem %s8, %s3082
      $region64: #{depth_seeding_network.1} parent=59 // pred_fallthru
        _
    $region60: #{depth_seeding_network.1} parent=5 // pred_fallthru
      _
  $region6: #{depth_seeding_network.1} parent=0 // loop_footer
    %s18 = sadd.s32 1, %s14
  $region7: #{depth_seeding_network.1} parent=0 // loop_footer_branch
    %13 = sbr.rel target = $region3
  $region8: #{depth_seeding_network.1} parent=0 // loop_exit
    _

</llo_original>
